<compile_context>
chip_gen: v7x
topology: tpu7x:2x2x1
jax: 0.10.0
libtpu: 0.0.40
codegen_flags: <defaults>
</compile_context>

<pallas_src>
import functools
import re

import jax
import jax.numpy as jnp
from jax import lax
from jax.experimental import pallas as pl
from jax.experimental.pallas import tpu as pltpu


def _pair(v):
    return tuple(v) if isinstance(v, (list, tuple)) else (v, v)


def _round_up(x, m):
    return -(-x // m) * m


# --------------------------- Hardware introspection -------------------------- #

def _tpu_info():
    """Returns (vmem_capacity_bytes, mxu_width, multi_core) with safe fallbacks."""
    vmem_cap = None
    try:
        vmem_cap = int(pltpu.get_tpu_info().vmem_capacity_bytes)
    except Exception:
        pass
    kind = ""
    try:
        kind = jax.devices()[0].device_kind.lower()
    except Exception:
        pass
    m = re.search(r"(\d+)", kind)
    gen = int(m.group(1)) if m else 6
    if vmem_cap is None:
        vmem_cap = (64 if gen >= 7 else 128) * 1024 * 1024
    mxu_width = 128 if gen <= 5 else 256     # v5e: 4x128^2 MXU; v6e/v7x: 2x256^2
    multi_core = gen >= 7                    # v7x: 2 TensorCores per chip
    return vmem_cap, mxu_width, multi_core


# ------------------------------ Pallas kernel -------------------------------- #

def _conv_bn_relu_kernel(x_ref, w_ref, shift_ref, o_ref, *,
                         kh, kw, sh, sw, dh, dw, tile_h, wout, activate):
    """One (batch n, output-row-tile t) grid step.

    x_ref:     (Hp, W_in, K)           padded (possibly kw-unfolded) image (bf16)
    w_ref:     (n_taps, K, Cout_p)     BN-scale-folded weight taps (bf16)
    shift_ref: (1, Cout_p)             per-channel shift (f32)
    o_ref:     (tile_h*wout, Cout_p)   output rows for this tile
    """
    t = pl.program_id(1)
    h_base = t * (tile_h * sh)
    k_dim = x_ref.shape[-1]
    rows = tile_h * wout

    def tap(i, j):
        h_start = h_base + i * dh
        h_idx = pl.ds(h_start, tile_h) if sh == 1 else pl.ds(h_start, tile_h, sh)
        if sw == 1:
            w_idx = slice(j * dw, j * dw + wout)
        else:
            w_idx = pl.ds(j * dw, wout, sw)
        # wout % 8 == 0 -> merging (tile_h, wout) into the sublane axis is free.
        return x_ref[h_idx, w_idx, :].reshape(rows, k_dim)

    # Peel the first tap: accumulator is the first MXU result (no zero-fill + add).
    acc = jnp.dot(tap(0, 0), w_ref[0], preferred_element_type=jnp.float32)
    for idx in range(1, kh * kw):                         # unrolled MXU matmuls
        i, j = divmod(idx, kw)
        acc = acc + jnp.dot(tap(i, j), w_ref[idx],
                            preferred_element_type=jnp.float32)

    y = acc + shift_ref[...]
    if activate:
        y = jnp.maximum(y, 0.0)                           # ReLU
    o_ref[...] = y.astype(o_ref.dtype)


# ----------------------------- Tiling / wrapper ------------------------------ #

def _select_tile_h(hout, wout_p, cout_p, k_dim, fixed_bytes, out_elt_bytes,
                   vmem_budget, max_rows=1024, min_steps=1):
    """Largest divisor t of Hout whose tile fits the VMEM budget, gives <= max_rows
    matmul rows, and leaves >= min_steps grid steps along the row-tile axis."""
    def tile_bytes(t):
        rows = t * wout_p
        # double-buffered output tile + f32 accumulator + bf16 xs slab per tap
        return rows * (cout_p * (2 * out_elt_bytes + 4) + 2 * k_dim)

    divisors = [t for t in range(1, hout + 1) if hout % t == 0]
    ok = [t for t in divisors
          if hout // t >= min_steps
          and t * wout_p <= max_rows
          and fixed_bytes + tile_bytes(t) <= vmem_budget]
    if ok:
        return max(ok)
    # Fallback: smallest tile that still honors min_steps (t=1 always divides Hout).
    fb = [t for t in divisors if hout // t >= min_steps] or [1]
    return min(fb)


def conv_block_forward(x, params, *, kernel_size, stride, padding, dilation=1,
                       groups=1, bias=False, use_bn=True, bn_eps=1e-5,
                       activate=True, out_dtype=jnp.float32,
                       in_layout="NCHW", out_layout="NCHW"):
    """ConvBlock forward (inference-mode BN). bf16 operands, f32 accumulation."""
    # TODO(synk): groups > 1 (grouped/depthwise conv) not implemented in this kernel.
    assert groups == 1, "only groups=1 supported"
    kh, kw = _pair(kernel_size)
    sh, sw = _pair(stride)
    dh, dw = _pair(dilation)

    # Padding: int / 2-tuple -> symmetric Conv2d padding; 4-tuple -> ZeroPad2d
    # (left, right, top, bottom), matching the PyTorch module.
    if isinstance(padding, (list, tuple)) and len(padding) == 4:
        pad_l, pad_r, pad_t, pad_b = padding
    else:
        ph, pw = _pair(padding)
        pad_t, pad_b, pad_l, pad_r = ph, ph, pw, pw

    if in_layout == "NHWC":
        N, H, W, Cin = x.shape
        x_nhwc = x.astype(jnp.bfloat16)
    else:
        N, Cin, H, W = x.shape
        x_nhwc = jnp.transpose(x, (0, 2, 3, 1)).astype(jnp.bfloat16)

    Hp = H + pad_t + pad_b
    Wp = W + pad_l + pad_r
    Hout = (Hp - (dh * (kh - 1) + 1)) // sh + 1
    Wout = (Wp - (dw * (kw - 1) + 1)) // sw + 1

    vmem_cap, mxu_width, multi_core = _tpu_info()

    # Pad Wout to a multiple of 8 (free sublane merge in-kernel); pad the image on
    # the right so every tap read of Wout_p columns stays in bounds.
    Wout_p = _round_up(Wout, 8)
    Wp_need = (kw - 1) * dw + (Wout_p - 1) * sw + 1
    x_nhwc = jnp.pad(x_nhwc, ((0, 0), (pad_t, pad_b),
                              (pad_l, pad_r + max(0, Wp_need - Wp)), (0, 0)))

    weight = params["weight"].astype(jnp.float32)             # (Cout, Cin, kh, kw)
    Cout = weight.shape[0]
    b = params["bias"].astype(jnp.float32) if bias else jnp.zeros((Cout,), jnp.float32)
    if use_bn:
        gamma = params["bn_gamma"].astype(jnp.float32)
        beta = params["bn_beta"].astype(jnp.float32)
        mean = params["bn_mean"].astype(jnp.float32)
        var = params["bn_var"].astype(jnp.float32)
        scale = gamma / jnp.sqrt(var + bn_eps)
        shift = beta + (b - mean) * scale
    else:
        scale = jnp.ones((Cout,), jnp.float32)
        shift = b

    # Fold the BN scale into the weight; the kernel only applies (+ shift, ReLU).
    w_scaled = weight * scale[:, None, None, None]
    w_khwc = jnp.transpose(w_scaled, (2, 3, 1, 0))            # (kh, kw, Cin, Cout)

    # Fold the kw taps into the MXU contraction dim when Cin is small: input becomes
    # (N, Hp, Wout_p, kw*Cin) (unit-stride W in-kernel), kernel runs kh matmuls with
    # K = kw*Cin instead of kh*kw matmuls with K = Cin.
    fold_kw = kw > 1 and Cin < mxu_width
    if fold_kw:
        taps = [x_nhwc[:, :, j * dw: j * dw + (Wout_p - 1) * sw + 1: sw, :]
                for j in range(kw)]
        x_in = jnp.concatenate(taps, axis=-1)
        w_taps = w_khwc.reshape(kh, kw * Cin, Cout)
        k_kw, k_sw, k_dw = 1, 1, 1
        W_in, K_dim = Wout_p, kw * Cin
    else:
        x_in = x_nhwc
        w_taps = w_khwc.reshape(kh * kw, Cin, Cout)
        k_kw, k_sw, k_dw = kw, sw, dw
        W_in, K_dim = x_nhwc.shape[2], Cin
    n_taps = w_taps.shape[0]

    # Output-channel padding: only when it costs <= 2x the true Cout (for tiny Cout
    # the masked store is much cheaper than 16x HBM write amplification).  On
    # 256-wide-MXU parts, Cout >= 192 rounds to a multiple of 256.
    widths = [256, 128] if (mxu_width >= 256 and Cout >= 192) else [128]
    Cout_p = Cout
    for m_ in widths:
        p_ = _round_up(Cout, m_)
        if p_ <= 2 * Cout:
            Cout_p = p_
            break
    if Cout_p != Cout:
        w_taps = jnp.pad(w_taps, ((0, 0), (0, 0), (0, Cout_p - Cout)))
        shift = jnp.pad(shift, (0, Cout_p - Cout))
    w_taps = w_taps.astype(jnp.bfloat16)
    shift = shift.reshape(1, Cout_p).astype(jnp.float32)

    out_elt = jnp.dtype(out_dtype).itemsize
    # VMEM resident independent of tile_h: double-buffered image block +
    # single-buffered weight taps + shift.
    fixed_bytes = (2 * Hp * W_in * K_dim * 2
                   + n_taps * K_dim * Cout_p * 2
                   + Cout_p * 4)
    vmem_budget = int(vmem_cap * 0.75)
    # v7x has 2 TensorCores: with N == 1 keep >= 2 grid steps on the row-tile axis.
    min_steps = 2 if (multi_core and N == 1 and Hout >= 2) else 1
    tile_h = _select_tile_h(Hout, Wout_p, Cout_p, K_dim, fixed_bytes, out_elt,
                            vmem_budget, min_steps=min_steps)
    rows = tile_h * Wout_p

    est = fixed_bytes + rows * (Cout_p * (2 * out_elt + 4) + 2 * K_dim)
    vmem_limit = int(min(max(int(est * 1.25), 32 * 1024 * 1024),
                         int(vmem_cap * 0.9)))
    if est > vmem_limit:
        # TODO(synk): add an "arbitrary" Cin-chunk reduction grid axis (and/or W
        # tiling) for layers whose resident weights/image exceed VMEM (v7x: 64 MiB).
        raise NotImplementedError(
            f"ConvBlock kernel needs ~{est / 2**20:.1f} MiB VMEM but only "
            f"{vmem_limit / 2**20:.1f} MiB is available on this chip.")

    kernel = functools.partial(
        _conv_bn_relu_kernel, kh=kh, kw=k_kw, sh=sh, sw=k_sw, dh=dh, dw=k_dw,
        tile_h=tile_h, wout=Wout_p, activate=activate)

    def run(single_buffer_invariants):
        inv = ({"pipeline_mode": pl.Buffered(1)} if single_buffer_invariants else {})
        return pl.pallas_call(
            kernel,
            out_shape=jax.ShapeDtypeStruct((N, Hout * Wout_p, Cout_p), out_dtype),
            grid_spec=pltpu.PrefetchScalarGridSpec(
                num_scalar_prefetch=0,
                grid=(N, Hout // tile_h),
                in_specs=[
                    # Full (kw-unfolded) padded image per batch element; reused
                    # across row tiles.
                    pl.BlockSpec((None, Hp, W_in, K_dim), lambda n, t: (n, 0, 0, 0)),
                    # Grid-invariant: single-buffered weight taps and shift.
                    pl.BlockSpec((n_taps, K_dim, Cout_p), lambda n, t: (0, 0, 0),
                                 **inv),
                    pl.BlockSpec((1, Cout_p), lambda n, t: (0, 0), **inv),
                ],
                out_specs=pl.BlockSpec((None, rows, Cout_p), lambda n, t: (n, t, 0)),
            ),
            compiler_params=pltpu.CompilerParams(
                dimension_semantics=("parallel", "parallel"),
                vmem_limit_bytes=vmem_limit),
        )(x_in, w_taps, shift)

    try:
        out = run(True)
    except Exception:
        # pipeline_mode=pl.Buffered(1) not supported on this jax build; fall back to
        # the default (double-buffered) pipelining for the invariant inputs.
        out = run(False)

    out = out.reshape(N, Hout, Wout_p, Cout_p)
    if Wout_p != Wout or Cout_p != Cout:
        out = out[:, :, :Wout, :Cout]
    if out_layout == "NHWC":            # chained ConvBlocks can skip the transpose
        return out
    return jnp.transpose(out, (0, 3, 1, 2))                   # back to NCHW


# ---------------------------------- Demo ------------------------------------- #

if __name__ == "__main__":
    # batch=2, in_channels=4, out_channels=8, 16x16 spatial, 3x3 conv,
    # stride=1, padding=1, BN + ReLU (ConvBlock defaults).
    N, Cin, H, W = 2, 4, 16, 16
    Cout, K = 8, 3
    key = jax.random.PRNGKey(0)
    kx, kw_, km, kv = jax.random.split(key, 4)

    x = jax.random.normal(kx, (N, Cin, H, W), jnp.float32)
    params = {
        "weight": jax.random.normal(kw_, (Cout, Cin, K, K), jnp.float32) * 0.1,
        "bias": jnp.zeros((Cout,), jnp.float32),
        "bn_gamma": jnp.ones((Cout,), jnp.float32),
        "bn_beta": jnp.zeros((Cout,), jnp.float32),
        "bn_mean": jax.random.normal(km, (Cout,), jnp.float32) * 0.1,
        "bn_var": jax.nn.softplus(jax.random.normal(kv, (Cout,), jnp.float32)) + 0.5,
    }

    out = conv_block_forward(
        x, params, kernel_size=K, stride=1, padding=1,
        dilation=1, groups=1, bias=False, use_bn=True, bn_eps=1e-5,
        activate=True)
    out = jax.block_until_ready(out)
    assert out.shape == (N, Cout, H, W), out.shape

    # Reference mirroring the kernel's quantization (bf16 operands, BN scale folded
    # into the weight, f32 accumulation) so only accumulation order differs.
    scale = params["bn_gamma"] / jnp.sqrt(params["bn_var"] + 1e-5)
    shift = params["bn_beta"] - params["bn_mean"] * scale
    w_folded = (params["weight"] * scale[:, None, None, None]).astype(jnp.bfloat16)
    ref = lax.conv_general_dilated(
        x.astype(jnp.bfloat16), w_folded, window_strides=(1, 1),
        padding=((1, 1), (1, 1)),
        dimension_numbers=("NCHW", "OIHW", "NCHW"),
        preferred_element_type=jnp.float32)
    ref = jnp.maximum(ref + shift[None, :, None, None], 0.0)
    max_err = float(jnp.max(jnp.abs(out - ref)))
    assert jnp.allclose(out, ref, atol=2e-2, rtol=2e-2), max_err

    print("KERNEL_OK")
</pallas_src>

<mosaic_0001>
module attributes {stable_mosaic.version = 11 : i64} {
  func.func @_conv_bn_relu_kernel(%arg0: i32, %arg1: i32, %arg2: memref<1x18x16x12xbf16, #tpu.memory_space<vmem>>, %arg3: memref<3x12x8xbf16, #tpu.memory_space<vmem>>, %arg4: memref<1x8xf32, #tpu.memory_space<vmem>>, %arg5: memref<1x256x8xf32, #tpu.memory_space<vmem>>) attributes {dimension_semantics = [#tpu.dimension_semantics<parallel>, #tpu.dimension_semantics<parallel>], iteration_bounds = array<i64: 2, 1>, scalar_prefetch = 0 : i64, scratch_operands = 0 : i64, tpu.core_type = #tpu.core_type<tc>, window_params = [{transform_indices = @transform_0, window_bounds = array<i64: 1, 18, 16, 12>}, {pipeline_mode = #tpu.pipeline_mode<synchronous>, transform_indices = @transform_1, window_bounds = array<i64: 3, 12, 8>}, {pipeline_mode = #tpu.pipeline_mode<synchronous>, transform_indices = @transform_2, window_bounds = array<i64: 1, 8>}, {transform_indices = @transform_3, window_bounds = array<i64: 1, 256, 8>}]} {
    %c16_i32 = arith.constant 16 : i32
    %0 = arith.muli %arg1, %c16_i32 : i32
    %c0_i32 = arith.constant 0 : i32
    %1 = arith.addi %0, %c0_i32 : i32
    %c0 = arith.constant 0 : index
    %2 = arith.index_cast %1 : i32 to index
    %c0_0 = arith.constant 0 : index
    %c0_1 = arith.constant 0 : index
    %3 = vector.load %arg2[%c0, %2, %c0_0, %c0_1] : memref<1x18x16x12xbf16, #tpu.memory_space<vmem>>, vector<1x16x16x12xbf16>
    %4 = vector.shape_cast %3 : vector<1x16x16x12xbf16> to vector<16x16x12xbf16>
    %5 = vector.shape_cast %4 : vector<16x16x12xbf16> to vector<256x12xbf16>
    %c0_2 = arith.constant 0 : index
    %c0_3 = arith.constant 0 : index
    %c0_4 = arith.constant 0 : index
    %6 = vector.load %arg3[%c0_2, %c0_3, %c0_4] : memref<3x12x8xbf16, #tpu.memory_space<vmem>>, vector<1x12x8xbf16>
    %7 = vector.shape_cast %6 : vector<1x12x8xbf16> to vector<12x8xbf16>
    %cst = arith.constant dense<0.000000e+00> : vector<256x8xf32>
    %8 = tpu.matmul %5, %7, %cst {dimension_numbers = #tpu.dot_dimension_numbers<[1], [0], [0], [1], [0, 0, 1, 1], [], []>} : vector<256x12xbf16>, vector<12x8xbf16>, vector<256x8xf32> -> vector<256x8xf32>
    %c1_i32 = arith.constant 1 : i32
    %9 = arith.addi %0, %c1_i32 : i32
    %c0_5 = arith.constant 0 : index
    %10 = arith.index_cast %9 : i32 to index
    %c0_6 = arith.constant 0 : index
    %c0_7 = arith.constant 0 : index
    %11 = vector.load %arg2[%c0_5, %10, %c0_6, %c0_7] : memref<1x18x16x12xbf16, #tpu.memory_space<vmem>>, vector<1x16x16x12xbf16>
    %12 = vector.shape_cast %11 : vector<1x16x16x12xbf16> to vector<16x16x12xbf16>
    %13 = vector.shape_cast %12 : vector<16x16x12xbf16> to vector<256x12xbf16>
    %c1 = arith.constant 1 : index
    %c0_8 = arith.constant 0 : index
    %c0_9 = arith.constant 0 : index
    %14 = vector.load %arg3[%c1, %c0_8, %c0_9] : memref<3x12x8xbf16, #tpu.memory_space<vmem>>, vector<1x12x8xbf16>
    %15 = vector.shape_cast %14 : vector<1x12x8xbf16> to vector<12x8xbf16>
    %cst_10 = arith.constant dense<0.000000e+00> : vector<256x8xf32>
    %16 = tpu.matmul %13, %15, %cst_10 {dimension_numbers = #tpu.dot_dimension_numbers<[1], [0], [0], [1], [0, 0, 1, 1], [], []>} : vector<256x12xbf16>, vector<12x8xbf16>, vector<256x8xf32> -> vector<256x8xf32>
    %17 = arith.addf %8, %16 : vector<256x8xf32>
    %c2_i32 = arith.constant 2 : i32
    %18 = arith.addi %0, %c2_i32 : i32
    %c0_11 = arith.constant 0 : index
    %19 = arith.index_cast %18 : i32 to index
    %c0_12 = arith.constant 0 : index
    %c0_13 = arith.constant 0 : index
    %20 = vector.load %arg2[%c0_11, %19, %c0_12, %c0_13] : memref<1x18x16x12xbf16, #tpu.memory_space<vmem>>, vector<1x16x16x12xbf16>
    %21 = vector.shape_cast %20 : vector<1x16x16x12xbf16> to vector<16x16x12xbf16>
    %22 = vector.shape_cast %21 : vector<16x16x12xbf16> to vector<256x12xbf16>
    %c2 = arith.constant 2 : index
    %c0_14 = arith.constant 0 : index
    %c0_15 = arith.constant 0 : index
    %23 = vector.load %arg3[%c2, %c0_14, %c0_15] : memref<3x12x8xbf16, #tpu.memory_space<vmem>>, vector<1x12x8xbf16>
    %24 = vector.shape_cast %23 : vector<1x12x8xbf16> to vector<12x8xbf16>
    %cst_16 = arith.constant dense<0.000000e+00> : vector<256x8xf32>
    %25 = tpu.matmul %22, %24, %cst_16 {dimension_numbers = #tpu.dot_dimension_numbers<[1], [0], [0], [1], [0, 0, 1, 1], [], []>} : vector<256x12xbf16>, vector<12x8xbf16>, vector<256x8xf32> -> vector<256x8xf32>
    %26 = arith.addf %17, %25 : vector<256x8xf32>
    %c0_17 = arith.constant 0 : index
    %c0_18 = arith.constant 0 : index
    %27 = vector.load %arg4[%c0_17, %c0_18] : memref<1x8xf32, #tpu.memory_space<vmem>>, vector<1x8xf32>
    %28 = vector.broadcast %27 : vector<1x8xf32> to vector<256x8xf32>
    %29 = arith.addf %26, %28 : vector<256x8xf32>
    %cst_19 = arith.constant 0.000000e+00 : f32
    %30 = vector.broadcast %cst_19 : f32 to vector<256x8xf32>
    %31 = arith.maximumf %29, %30 : vector<256x8xf32>
    %c0_20 = arith.constant 0 : index
    %c0_21 = arith.constant 0 : index
    %c0_22 = arith.constant 0 : index
    %32 = vector.load %arg5[%c0_20, %c0_21, %c0_22] : memref<1x256x8xf32, #tpu.memory_space<vmem>>, vector<1x256x8xf32>
    %33 = vector.shape_cast %32 : vector<1x256x8xf32> to vector<256x8xf32>
    %34 = vector.shape_cast %31 : vector<256x8xf32> to vector<1x256x8xf32>
    tpu.vector_store %arg5[%c0_20, %c0_21, %c0_22], %34 {strides = array<i32>} : memref<1x256x8xf32, #tpu.memory_space<vmem>>, vector<1x256x8xf32>,
    return
  }
  func.func @transform_0(%arg0: i32, %arg1: i32) -> (i32, i32, i32, i32) {
    %c0_i32 = arith.constant 0 : i32
    %c0_i32_0 = arith.constant 0 : i32
    %c0_i32_1 = arith.constant 0 : i32
    %c0_i32_2 = arith.constant 0 : i32
    return %arg0, %c0_i32, %c0_i32_0, %c0_i32_1 : i32, i32, i32, i32
  }
  func.func @transform_1(%arg0: i32, %arg1: i32) -> (i32, i32, i32) {
    %c0_i32 = arith.constant 0 : i32
    %c0_i32_0 = arith.constant 0 : i32
    %c0_i32_1 = arith.constant 0 : i32
    %c0_i32_2 = arith.constant 0 : i32
    return %c0_i32, %c0_i32_0, %c0_i32_1 : i32, i32, i32
  }
  func.func @transform_2(%arg0: i32, %arg1: i32) -> (i32, i32) {
    %c0_i32 = arith.constant 0 : i32
    %c0_i32_0 = arith.constant 0 : i32
    %c0_i32_1 = arith.constant 0 : i32
    return %c0_i32, %c0_i32_0 : i32, i32
  }
  func.func @transform_3(%arg0: i32, %arg1: i32) -> (i32, i32, i32) {
    %c0_i32 = arith.constant 0 : i32
    %c0_i32_0 = arith.constant 0 : i32
    return %arg0, %arg1, %c0_i32 : i32, i32, i32
  }
}

module attributes {stable_mosaic.version = 11 : i64} {
  func.func @_conv_bn_relu_kernel(%arg0: i32, %arg1: i32, %arg2: memref<1x18x16x12xbf16, #tpu.memory_space<vmem>>, %arg3: memref<3x12x8xbf16, #tpu.memory_space<vmem>>, %arg4: memref<1x8xf32, #tpu.memory_space<vmem>>, %arg5: memref<1x256x8xf32, #tpu.memory_space<vmem>>) attributes {dimension_semantics = [#tpu.dimension_semantics<parallel>, #tpu.dimension_semantics<parallel>], iteration_bounds = array<i64: 2, 1>, scalar_prefetch = 0 : i64, scratch_operands = 0 : i64, tpu.core_type = #tpu.core_type<tc>, window_params = [{transform_indices = @transform_0, window_bounds = array<i64: 1, 18, 16, 12>}, {pipeline_mode = #tpu.pipeline_mode<synchronous>, transform_indices = @transform_1, window_bounds = array<i64: 3, 12, 8>}, {pipeline_mode = #tpu.pipeline_mode<synchronous>, transform_indices = @transform_2, window_bounds = array<i64: 1, 8>}, {transform_indices = @transform_3, window_bounds = array<i64: 1, 256, 8>}]} {
    %c16_i32 = arith.constant 16 : i32
    %0 = arith.muli %arg1, %c16_i32 : i32
    %c0_i32 = arith.constant 0 : i32
    %1 = arith.addi %0, %c0_i32 : i32
    %c0 = arith.constant 0 : index
    %2 = arith.index_cast %1 : i32 to index
    %c0_0 = arith.constant 0 : index
    %c0_1 = arith.constant 0 : index
    %3 = vector.load %arg2[%c0, %2, %c0_0, %c0_1] : memref<1x18x16x12xbf16, #tpu.memory_space<vmem>>, vector<1x16x16x12xbf16>
    %4 = vector.shape_cast %3 : vector<1x16x16x12xbf16> to vector<16x16x12xbf16>
    %5 = vector.shape_cast %4 : vector<16x16x12xbf16> to vector<256x12xbf16>
    %c0_2 = arith.constant 0 : index
    %c0_3 = arith.constant 0 : index
    %c0_4 = arith.constant 0 : index
    %6 = vector.load %arg3[%c0_2, %c0_3, %c0_4] : memref<3x12x8xbf16, #tpu.memory_space<vmem>>, vector<1x12x8xbf16>
    %7 = vector.shape_cast %6 : vector<1x12x8xbf16> to vector<12x8xbf16>
    %cst = arith.constant dense<0.000000e+00> : vector<256x8xf32>
    %8 = tpu.matmul %5, %7, %cst {dimension_numbers = #tpu.dot_dimension_numbers<[1], [0], [0], [1], [0, 0, 1, 1], [], []>} : vector<256x12xbf16>, vector<12x8xbf16>, vector<256x8xf32> -> vector<256x8xf32>
    %c1_i32 = arith.constant 1 : i32
    %9 = arith.addi %0, %c1_i32 : i32
    %c0_5 = arith.constant 0 : index
    %10 = arith.index_cast %9 : i32 to index
    %c0_6 = arith.constant 0 : index
    %c0_7 = arith.constant 0 : index
    %11 = vector.load %arg2[%c0_5, %10, %c0_6, %c0_7] : memref<1x18x16x12xbf16, #tpu.memory_space<vmem>>, vector<1x16x16x12xbf16>
    %12 = vector.shape_cast %11 : vector<1x16x16x12xbf16> to vector<16x16x12xbf16>
    %13 = vector.shape_cast %12 : vector<16x16x12xbf16> to vector<256x12xbf16>
    %c1 = arith.constant 1 : index
    %c0_8 = arith.constant 0 : index
    %c0_9 = arith.constant 0 : index
    %14 = vector.load %arg3[%c1, %c0_8, %c0_9] : memref<3x12x8xbf16, #tpu.memory_space<vmem>>, vector<1x12x8xbf16>
    %15 = vector.shape_cast %14 : vector<1x12x8xbf16> to vector<12x8xbf16>
    %cst_10 = arith.constant dense<0.000000e+00> : vector<256x8xf32>
    %16 = tpu.matmul %13, %15, %cst_10 {dimension_numbers = #tpu.dot_dimension_numbers<[1], [0], [0], [1], [0, 0, 1, 1], [], []>} : vector<256x12xbf16>, vector<12x8xbf16>, vector<256x8xf32> -> vector<256x8xf32>
    %17 = arith.addf %8, %16 : vector<256x8xf32>
    %c2_i32 = arith.constant 2 : i32
    %18 = arith.addi %0, %c2_i32 : i32
    %c0_11 = arith.constant 0 : index
    %19 = arith.index_cast %18 : i32 to index
    %c0_12 = arith.constant 0 : index
    %c0_13 = arith.constant 0 : index
    %20 = vector.load %arg2[%c0_11, %19, %c0_12, %c0_13] : memref<1x18x16x12xbf16, #tpu.memory_space<vmem>>, vector<1x16x16x12xbf16>
    %21 = vector.shape_cast %20 : vector<1x16x16x12xbf16> to vector<16x16x12xbf16>
    %22 = vector.shape_cast %21 : vector<16x16x12xbf16> to vector<256x12xbf16>
    %c2 = arith.constant 2 : index
    %c0_14 = arith.constant 0 : index
    %c0_15 = arith.constant 0 : index
    %23 = vector.load %arg3[%c2, %c0_14, %c0_15] : memref<3x12x8xbf16, #tpu.memory_space<vmem>>, vector<1x12x8xbf16>
    %24 = vector.shape_cast %23 : vector<1x12x8xbf16> to vector<12x8xbf16>
    %cst_16 = arith.constant dense<0.000000e+00> : vector<256x8xf32>
    %25 = tpu.matmul %22, %24, %cst_16 {dimension_numbers = #tpu.dot_dimension_numbers<[1], [0], [0], [1], [0, 0, 1, 1], [], []>} : vector<256x12xbf16>, vector<12x8xbf16>, vector<256x8xf32> -> vector<256x8xf32>
    %26 = arith.addf %17, %25 : vector<256x8xf32>
    %c0_17 = arith.constant 0 : index
    %c0_18 = arith.constant 0 : index
    %27 = vector.load %arg4[%c0_17, %c0_18] : memref<1x8xf32, #tpu.memory_space<vmem>>, vector<1x8xf32>
    %28 = vector.broadcast %27 : vector<1x8xf32> to vector<256x8xf32>
    %29 = arith.addf %26, %28 : vector<256x8xf32>
    %cst_19 = arith.constant 0.000000e+00 : f32
    %30 = vector.broadcast %cst_19 : f32 to vector<256x8xf32>
    %31 = arith.maximumf %29, %30 : vector<256x8xf32>
    %c0_20 = arith.constant 0 : index
    %c0_21 = arith.constant 0 : index
    %c0_22 = arith.constant 0 : index
    %32 = vector.load %arg5[%c0_20, %c0_21, %c0_22] : memref<1x256x8xf32, #tpu.memory_space<vmem>>, vector<1x256x8xf32>
    %33 = vector.shape_cast %32 : vector<1x256x8xf32> to vector<256x8xf32>
    %34 = vector.shape_cast %31 : vector<256x8xf32> to vector<1x256x8xf32>
    tpu.vector_store %arg5[%c0_20, %c0_21, %c0_22], %34 {strides = array<i32>} : memref<1x256x8xf32, #tpu.memory_space<vmem>>, vector<1x256x8xf32>,
    return
  }
  func.func @transform_0(%arg0: i32, %arg1: i32) -> (i32, i32, i32, i32) {
    %c0_i32 = arith.constant 0 : i32
    %c0_i32_0 = arith.constant 0 : i32
    %c0_i32_1 = arith.constant 0 : i32
    %c0_i32_2 = arith.constant 0 : i32
    return %arg0, %c0_i32, %c0_i32_0, %c0_i32_1 : i32, i32, i32, i32
  }
  func.func @transform_1(%arg0: i32, %arg1: i32) -> (i32, i32, i32) {
    %c0_i32 = arith.constant 0 : i32
    %c0_i32_0 = arith.constant 0 : i32
    %c0_i32_1 = arith.constant 0 : i32
    %c0_i32_2 = arith.constant 0 : i32
    return %c0_i32, %c0_i32_0, %c0_i32_1 : i32, i32, i32
  }
  func.func @transform_2(%arg0: i32, %arg1: i32) -> (i32, i32) {
    %c0_i32 = arith.constant 0 : i32
    %c0_i32_0 = arith.constant 0 : i32
    %c0_i32_1 = arith.constant 0 : i32
    return %c0_i32, %c0_i32_0 : i32, i32
  }
  func.func @transform_3(%arg0: i32, %arg1: i32) -> (i32, i32, i32) {
    %c0_i32 = arith.constant 0 : i32
    %c0_i32_0 = arith.constant 0 : i32
    return %arg0, %arg1, %c0_i32 : i32, i32, i32
  }
}

</mosaic_0001>

<llo_original>
// kernel: tpu_custom_call.1
$region0: #{tpu_custom_call.1}
  #allocation0 [shape = 'u32[]', space=smem, size = 0x4, offset = 0x4, fixed_abs, tag = 'smem constant byte address 0x4 - core index']
  #allocation1 [shape = 'u32[144,128]{1,0:T(1,128)}', space=vmem, size = 0x12000, scoped, tag = 'internal scratch']
  %s0 = inlined_call_operand.vmem [shape: bf16[2,18,16,12], index: 0, kind: input, shape index: {}]
  %s1 = inlined_call_operand.vmem [shape: bf16[3,12,8], index: 1, kind: input, shape index: {}]
  %s2 = inlined_call_operand.vmem [shape: f32[1,8], index: 2, kind: input, shape index: {}]
  %s3 = inlined_call_operand.vmem [shape: f32[2,256,8], index: 3, kind: output, shape index: {}]
  %s4 = sld [smem:[#allocation0]]
  $region45: #{tpu_custom_call.1} parent=0
    _
  %s6 = ssub.s32 1, %s4
  %s7 = scalar_select 0, %s6, %s4
  loop: start=0, step=1, limit=4
  $region2: #{tpu_custom_call.1} parent=0 // loop_pre_header
    _
  $region3: #{tpu_custom_call.1} parent=0 // loop_header
    %s9 = sphi 0, %s13
    %p10 = scmp.ge.s32.totalorder %s9, 4
    %s16 = sphi 0, %s28
    %s17 = sphi 0, %s24
    %s18 = sphi 0, %s16
    %s19 = sphi 0, %s17
    %s20 = sphi 0, %s18
    %s21 = sphi 0, %s19
    %s31 = sphi 0, %s33
    %s34 = sphi 0, %s31
    %s35 = sphi 0, %s34
    %s51 = sphi 0, %s35
    %s55 = sphi 0, %s55
    %s57 = sphi 0, %s55
    %s58 = sphi 0, %s57
    %s72 = sphi 0, %s58
    %s76 = sphi 0, %s76
    %s78 = sphi 0, %s76
    %s79 = sphi 0, %s78
    %s93 = sphi 0, %s79
    %s101 = sphi 0, %s103
    %s104 = sphi 0, %s101
    %s105 = sphi 0, %s104
    %s121 = sphi 0, %s105
  $region4: #{tpu_custom_call.1} parent=0 // loop_header_branch
    %12 = sbr.rel (%p10) target = $region8
  $region5: #{tpu_custom_call.1} parent=0 // loop_body
    %s14 = ssub.s32 %s9, 1
    %s15 = ssub.s32 %s9, 2
    %s22 = sadd.s32 1, %s17
    %p23 = scmp.ge.s32.totalorder %s22, 1
    %s24 = scalar_select %p23, 0, %s22
    %s25 = sadd.s32 1, %s16
    %s26 = scalar_select %p23, %s25, %s16
    %p27 = scmp.ge.s32.totalorder %s26, 2
    %s28 = scalar_select %p27, 0, %s26
    %s29 = ssub.s32 %s16, %s28
    %p30 = scmp.eq.s32.totalorder %s29, 0
    %s32 = sadd.s32 %s31, 1
    %s33 = scalar_select %p30, %s31, %s32
    %p36 = pneg %p30
    %p37 = scmp.eq.s32.totalorder %s9, 1
    %p38 = por %p36, %p37
    %p39 = scmp.ne.s32.totalorder %s31, %s34
    %p40 = scmp.eq.s32.totalorder %s9, 0
    %p41 = por %p39, %p40
    %p42 = scmp.ne.s32.totalorder %s31, %s34
    %p43 = scmp.eq.s32.totalorder %s14, 1
    %p44 = por %p42, %p43
    %p45 = scmp.ne.s32.totalorder %s34, %s35
    %p46 = scmp.eq.s32.totalorder %s14, 0
    %p47 = por %p45, %p46
    %p48 = scmp.ne.s32.totalorder %s34, %s35
    %p49 = scmp.eq.s32.totalorder %s15, 1
    %p50 = por %p48, %p49
    %p52 = scmp.ne.s32.totalorder %s35, %s51
    %p53 = scmp.eq.s32.totalorder %s15, 0
    %p54 = por %p52, %p53
    %s56 = sadd.s32 %s55, 1
    %p59 = scmp.eq.s32.totalorder %s9, 1
    %p60 = scmp.ne.s32.totalorder %s55, %s57
    %p61 = scmp.eq.s32.totalorder %s9, 0
    %p62 = por %p60, %p61
    %p63 = scmp.ne.s32.totalorder %s55, %s57
    %p64 = scmp.eq.s32.totalorder %s14, 1
    %p65 = por %p63, %p64
    %p66 = scmp.ne.s32.totalorder %s57, %s58
    %p67 = scmp.eq.s32.totalorder %s14, 0
    %p68 = por %p66, %p67
    %p69 = scmp.ne.s32.totalorder %s57, %s58
    %p70 = scmp.eq.s32.totalorder %s15, 1
    %p71 = por %p69, %p70
    %p73 = scmp.ne.s32.totalorder %s58, %s72
    %p74 = scmp.eq.s32.totalorder %s15, 0
    %p75 = por %p73, %p74
    %s77 = sadd.s32 %s76, 1
    %p80 = scmp.eq.s32.totalorder %s9, 1
    %p81 = scmp.ne.s32.totalorder %s76, %s78
    %p82 = scmp.eq.s32.totalorder %s9, 0
    %p83 = por %p81, %p82
    %p84 = scmp.ne.s32.totalorder %s76, %s78
    %p85 = scmp.eq.s32.totalorder %s14, 1
    %p86 = por %p84, %p85
    %p87 = scmp.ne.s32.totalorder %s78, %s79
    %p88 = scmp.eq.s32.totalorder %s14, 0
    %p89 = por %p87, %p88
    %p90 = scmp.ne.s32.totalorder %s78, %s79
    %p91 = scmp.eq.s32.totalorder %s15, 1
    %p92 = por %p90, %p91
    %p94 = scmp.ne.s32.totalorder %s79, %s93
    %p95 = scmp.eq.s32.totalorder %s15, 0
    %p96 = por %p94, %p95
    %s97 = ssub.s32 %s16, %s28
    %s98 = ssub.s32 %s17, %s24
    %s99 = sor.u32 %s97, %s98
    %p100 = scmp.eq.s32.totalorder %s99, 0
    %s102 = sadd.s32 %s101, 1
    %s103 = scalar_select %p100, %s101, %s102
    %p106 = pneg %p100
    %p107 = scmp.eq.s32.totalorder %s9, 1
    %p108 = por %p106, %p107
    %p109 = scmp.ne.s32.totalorder %s101, %s104
    %p110 = scmp.eq.s32.totalorder %s9, 0
    %p111 = por %p109, %p110
    %p112 = scmp.ne.s32.totalorder %s101, %s104
    %p113 = scmp.eq.s32.totalorder %s14, 1
    %p114 = por %p112, %p113
    %p115 = scmp.ne.s32.totalorder %s104, %s105
    %p116 = scmp.eq.s32.totalorder %s14, 0
    %p117 = por %p115, %p116
    %p118 = scmp.ne.s32.totalorder %s104, %s105
    %p119 = scmp.eq.s32.totalorder %s15, 1
    %p120 = por %p118, %p119
    %p122 = scmp.ne.s32.totalorder %s105, %s121
    %p123 = scmp.eq.s32.totalorder %s15, 0
    %p124 = por %p122, %p123
    %p125 = scmp.le.s32.totalorder 1, %s9
    %p126 = scmp.lt.s32.totalorder %s9, 3
    %p127 = pnand %p125, %p126
    %p128 = pneg %p127
    // Predicated region
    $region9: #{tpu_custom_call.1} parent=5 // pred_check
      _
    $region10: #{tpu_custom_call.1} parent=5 // pred_check_branch
      %130 = sbr.rel (%p127) target = $region12
    $region11: #{tpu_custom_call.1} parent=5 // pred_region
      %s131 = ssub.s32 %s9, 1
      // Predicated region
      $region13: #{tpu_custom_call.1} parent=11 // pred_check
        %p132 = pneg %p68
      $region14: #{tpu_custom_call.1} parent=11 // pred_check_branch
        %134 = sbr.rel (%p132) target = $region16
      $region15: #{tpu_custom_call.1} parent=11 // pred_region
        _
      $region16: #{tpu_custom_call.1} parent=11 // pred_fallthru
        _
      // Predicated region
      $region17: #{tpu_custom_call.1} parent=11 // pred_check
        %p135 = pneg %p89
      $region18: #{tpu_custom_call.1} parent=11 // pred_check_branch
        %137 = sbr.rel (%p135) target = $region20
      $region19: #{tpu_custom_call.1} parent=11 // pred_region
        _
      $region20: #{tpu_custom_call.1} parent=11 // pred_fallthru
        _
    $region12: #{tpu_custom_call.1} parent=5 // pred_fallthru
      _
    %p138 = scmp.lt.s32.totalorder %s9, 2
    // Predicated region
    $region21: #{tpu_custom_call.1} parent=5 // pred_check
      %p139 = pneg %p138
    $region22: #{tpu_custom_call.1} parent=5 // pred_check_branch
      %141 = sbr.rel (%p139) target = $region24
    $region23: #{tpu_custom_call.1} parent=5 // pred_region
      // Predicated region
      $region25: #{tpu_custom_call.1} parent=23 // pred_check
        %p142 = pneg %p41
      $region26: #{tpu_custom_call.1} parent=23 // pred_check_branch
        %144 = sbr.rel (%p142) target = $region28
      $region27: #{tpu_custom_call.1} parent=23 // pred_region
        %p145 = scmp.lt.s32.totalorder %s16, 1
        %s146 = scalar_select %p145, %s16, 1
        %s147 = smul.addr %s146, 36
        %s148 = smul.addr %s147, 4
        %s149 = scalar_lea.vmem %s0, %s148
      $region28: #{tpu_custom_call.1} parent=23 // pred_fallthru
        _
    $region24: #{tpu_custom_call.1} parent=5 // pred_fallthru
      _
    %p150 = scmp.le.s32.totalorder 1, %s9
    %p151 = scmp.lt.s32.totalorder %s9, 3
    %p152 = pnand %p150, %p151
    %p153 = pneg %p152
    // Predicated region
    $region29: #{tpu_custom_call.1} parent=5 // pred_check
      _
    $region30: #{tpu_custom_call.1} parent=5 // pred_check_branch
      %155 = sbr.rel (%p152) target = $region32
    $region31: #{tpu_custom_call.1} parent=5 // pred_region
      %s156 = ssub.s32 %s9, 1
      %p157 = scmp.lt.s32.totalorder %s18, 1
      %s158 = scalar_select %p157, %s18, 1
      %s159 = smul.addr %s158, 36
      %s160 = smul.addr %s159, 4
      %s161 = scalar_lea.vmem %s0, %s160
      %p162 = pneg %p47
      %p163 = pneg %p44
      %p164 = pneg %p68
      %p165 = pneg %p65
      %p166 = pneg %p89
      %p167 = pneg %p86
      %p168 = pneg %p117
      %p169 = pneg %p114
      %s170 = smul.u32 32, %s19
      %p171 = scmp.lt.s32.totalorder %s18, 1
      %s172 = scalar_select %p171, %s18, 1
      %p173 = scmp.lt.s32.totalorder %s170, 31
      %s174 = scalar_select %p173, %s170, 31
      %s175 = smul.addr %s172, 32
      %s176 = sadd.s32 %s174, %s175
      %s177 = smul.addr %s176, 8
      %s178 = scalar_lea.vmem %s3, %s177
      %p179 = scmp.lt.s32.totalorder %s18, 1
      %s180 = scalar_select %p179, %s18, 1
      %s181 = smul.addr %s180, 36
      %s182 = smul.addr %s181, 4
      %s183 = scalar_lea.vmem %s0, %s182
      %s184 = smul.u32 32, %s19
      %p185 = scmp.lt.s32.totalorder %s18, 1
      %s186 = scalar_select %p185, %s18, 1
      %p187 = scmp.lt.s32.totalorder %s184, 31
      %s188 = scalar_select %p187, %s184, 31
      %s189 = smul.addr %s186, 32
      %s190 = sadd.s32 %s188, %s189
      %s191 = smul.addr %s190, 8
      %s192 = scalar_lea.vmem %s3, %s191
      %s193 = smul.u32 32, %s19
      %s195 = smul.u32 %s19, 16
      %s196 = smul.u32 %s195, 2
      %s197 = smul.addr %s196, 4
      %s198 = scalar_lea.vmem %s183, %s197
      %v199 = vld [vmem:[%s198] sm:$0xf]
      %v200 = vld [vmem:[%s198 + $0x4] sm:$0xf]
      %v201 = vld [vmem:[%s198 + $0x8] sm:$0xf]
      %v202 = vld [vmem:[%s198 + $0xc] sm:$0xf]
      %v203 = vld [vmem:[%s198 + $0x10] sm:$0xf]
      %v204 = vld [vmem:[%s198 + $0x14] sm:$0xf]
      %v205 = vld [vmem:[%s198 + $0x18] sm:$0xf]
      %v206 = vld [vmem:[%s198 + $0x1c] sm:$0xf]
      %v207 = vld [vmem:[%s198 + $0x20] sm:$0xf]
      %v208 = vld [vmem:[%s198 + $0x24] sm:$0xf]
      %v209 = vld [vmem:[%s198 + $0x28] sm:$0xf]
      %v210 = vld [vmem:[%s198 + $0x2c] sm:$0xf]
      %v211 = vld [vmem:[%s198 + $0x30] sm:$0xf]
      %v212 = vld [vmem:[%s198 + $0x34] sm:$0xf]
      %v213 = vld [vmem:[%s198 + $0x38] sm:$0xf]
      %v214 = vld [vmem:[%s198 + $0x3c] sm:$0xf]
      %v215 = vld [vmem:[%s198 + $0x40] sm:$0xf]
      %v216 = vld [vmem:[%s198 + $0x44] sm:$0xf]
      %v217 = vld [vmem:[%s198 + $0x48] sm:$0xf]
      %v218 = vld [vmem:[%s198 + $0x4c] sm:$0xf]
      %v219 = vld [vmem:[%s198 + $0x50] sm:$0xf]
      %v220 = vld [vmem:[%s198 + $0x54] sm:$0xf]
      %v221 = vld [vmem:[%s198 + $0x58] sm:$0xf]
      %v222 = vld [vmem:[%s198 + $0x5c] sm:$0xf]
      %v223 = vld [vmem:[%s198 + $0x60] sm:$0xf]
      %v224 = vld [vmem:[%s198 + $0x64] sm:$0xf]
      %v225 = vld [vmem:[%s198 + $0x68] sm:$0xf]
      %v226 = vld [vmem:[%s198 + $0x6c] sm:$0xf]
      %v227 = vld [vmem:[%s198 + $0x70] sm:$0xf]
      %v228 = vld [vmem:[%s198 + $0x74] sm:$0xf]
      %v229 = vld [vmem:[%s198 + $0x78] sm:$0xf]
      %v230 = vld [vmem:[%s198 + $0x7c] sm:$0xf]
      %v231 = vld [vmem:[%s1] sm:$0xf]
      %v232 = vld [vmem:[%s1 + $0x4] sm:$0x3]
      %s233 = sadd.s32 %s195, 1
      %s234 = smul.u32 %s233, 2
      %s235 = smul.addr %s234, 4
      %s236 = scalar_lea.vmem %s183, %s235
      %v237 = vld [vmem:[%s236] sm:$0xf]
      %v238 = vld [vmem:[%s236 + $0x4] sm:$0xf]
      %v239 = vld [vmem:[%s236 + $0x8] sm:$0xf]
      %v240 = vld [vmem:[%s236 + $0xc] sm:$0xf]
      %v241 = vld [vmem:[%s236 + $0x10] sm:$0xf]
      %v242 = vld [vmem:[%s236 + $0x14] sm:$0xf]
      %v243 = vld [vmem:[%s236 + $0x18] sm:$0xf]
      %v244 = vld [vmem:[%s236 + $0x1c] sm:$0xf]
      %v245 = vld [vmem:[%s236 + $0x20] sm:$0xf]
      %v246 = vld [vmem:[%s236 + $0x24] sm:$0xf]
      %v247 = vld [vmem:[%s236 + $0x28] sm:$0xf]
      %v248 = vld [vmem:[%s236 + $0x2c] sm:$0xf]
      %v249 = vld [vmem:[%s236 + $0x30] sm:$0xf]
      %v250 = vld [vmem:[%s236 + $0x34] sm:$0xf]
      %v251 = vld [vmem:[%s236 + $0x38] sm:$0xf]
      %v252 = vld [vmem:[%s236 + $0x3c] sm:$0xf]
      %v253 = vld [vmem:[%s236 + $0x40] sm:$0xf]
      %v254 = vld [vmem:[%s236 + $0x44] sm:$0xf]
      %v255 = vld [vmem:[%s236 + $0x48] sm:$0xf]
      %v256 = vld [vmem:[%s236 + $0x4c] sm:$0xf]
      %v257 = vld [vmem:[%s236 + $0x50] sm:$0xf]
      %v258 = vld [vmem:[%s236 + $0x54] sm:$0xf]
      %v259 = vld [vmem:[%s236 + $0x58] sm:$0xf]
      %v260 = vld [vmem:[%s236 + $0x5c] sm:$0xf]
      %v261 = vld [vmem:[%s236 + $0x60] sm:$0xf]
      %v262 = vld [vmem:[%s236 + $0x64] sm:$0xf]
      %v263 = vld [vmem:[%s236 + $0x68] sm:$0xf]
      %v264 = vld [vmem:[%s236 + $0x6c] sm:$0xf]
      %v265 = vld [vmem:[%s236 + $0x70] sm:$0xf]
      %v266 = vld [vmem:[%s236 + $0x74] sm:$0xf]
      %v267 = vld [vmem:[%s236 + $0x78] sm:$0xf]
      %v268 = vld [vmem:[%s236 + $0x7c] sm:$0xf]
      %s269 = scalar_lea.vmem %s1, 8
      %v270 = vld [vmem:[%s269] sm:$0xf]
      %v271 = vld [vmem:[%s269 + $0x4] sm:$0x3]
      %v304 = vunpack.c.l.b16 %v237
      %v305 = vunpack.c.l.b16 %v238
      %v306 = vunpack.c.l.b16 %v239
      %v307 = vunpack.c.l.b16 %v240
      %v308 = vunpack.c.l.b16 %v241
      %v309 = vunpack.c.l.b16 %v242
      %v310 = vunpack.c.l.b16 %v243
      %v311 = vunpack.c.l.b16 %v244
      %v312 = vunpack.c.l.b16 %v245
      %v313 = vunpack.c.l.b16 %v246
      %v314 = vunpack.c.l.b16 %v247
      %v315 = vunpack.c.l.b16 %v248
      %v316 = vunpack.c.l.b16 %v249
      %v317 = vunpack.c.l.b16 %v250
      %v318 = vunpack.c.l.b16 %v251
      %v319 = vunpack.c.l.b16 %v252
      %v320 = vunpack.c.l.b16 %v253
      %v321 = vunpack.c.l.b16 %v254
      %v322 = vunpack.c.l.b16 %v255
      %v323 = vunpack.c.l.b16 %v256
      %v324 = vunpack.c.l.b16 %v257
      %v325 = vunpack.c.l.b16 %v258
      %v326 = vunpack.c.l.b16 %v259
      %v327 = vunpack.c.l.b16 %v260
      %v328 = vunpack.c.l.b16 %v261
      %v329 = vunpack.c.l.b16 %v262
      %v330 = vunpack.c.l.b16 %v263
      %v331 = vunpack.c.l.b16 %v264
      %v332 = vunpack.c.l.b16 %v265
      %v333 = vunpack.c.l.b16 %v266
      %v334 = vunpack.c.l.b16 %v267
      %v335 = vunpack.c.l.b16 %v268
      %v336 = vpack.c.b16 %v305, %v304
      %v337 = vpack.c.b16 %v307, %v306
      %v338 = vpack.c.b16 %v309, %v308
      %v339 = vpack.c.b16 %v311, %v310
      %v340 = vpack.c.b16 %v313, %v312
      %v341 = vpack.c.b16 %v315, %v314
      %v342 = vpack.c.b16 %v317, %v316
      %v343 = vpack.c.b16 %v319, %v318
      %v344 = vpack.c.b16 %v321, %v320
      %v345 = vpack.c.b16 %v323, %v322
      %v346 = vpack.c.b16 %v325, %v324
      %v347 = vpack.c.b16 %v327, %v326
      %v348 = vpack.c.b16 %v329, %v328
      %v349 = vpack.c.b16 %v331, %v330
      %v350 = vpack.c.b16 %v333, %v332
      %v351 = vpack.c.b16 %v335, %v334
      %v354 = vunpack.c.l.b16 %v270
      %v355 = vunpack.c.l.b16 %v271
      %v356 = vpack.c.b16 %v355, %v354
      %vm357 = vcmask 97280
      %v359 = vsel %vm357, %v336, 0
      %v362 = vsel %vm357, %v337, 0
      %v365 = vsel %vm357, %v338, 0
      %v368 = vsel %vm357, %v339, 0
      %v371 = vsel %vm357, %v340, 0
      %v374 = vsel %vm357, %v341, 0
      %v377 = vsel %vm357, %v342, 0
      %v380 = vsel %vm357, %v343, 0
      %v383 = vsel %vm357, %v344, 0
      %v386 = vsel %vm357, %v345, 0
      %v389 = vsel %vm357, %v346, 0
      %v392 = vsel %vm357, %v347, 0
      %v395 = vsel %vm357, %v348, 0
      %v398 = vsel %vm357, %v349, 0
      %v401 = vsel %vm357, %v350, 0
      %v404 = vsel %vm357, %v351, 0
      %vm406 = vcmask 1045504
      %v408 = vsel %vm406, %v356, 0
      %410 = vmatprep.subr.bf16.mxu0 0
      %411 = vmatpush1.bf16.msra.mxu0 %v408
      %412 = vmatprep.subr.bf16.mxu0 0
      %413 = vmatpush1.bf16.msra.mxu0 0
      %414 = vmatprep.subr.bf16.mxu0 0
      %415 = vmatpush1.bf16.msra.mxu0 0
      %416 = vmatprep.subr.bf16.mxu0 0
      %417 = vmatpush1.bf16.msra.mxu0 0
      %418 = vmatprep.subr.bf16.mxu0 0
      %419 = vmatpush1.bf16.msra.mxu0 0
      %420 = vmatprep.subr.bf16.mxu0 0
      %421 = vmatpush1.bf16.msra.mxu0 0
      %422 = vmatprep.subr.bf16.mxu0 0
      %423 = vmatpush1.bf16.msra.mxu0 0
      %424 = vmatprep.subr.bf16.mxu0 0
      %425 = vmatpush1.bf16.msra.mxu0 0
      %426 = vmatprep.subr.bf16.mxu0 0
      %427 = vmatpush1.bf16.msra.mxu0 0
      %428 = vmatprep.subr.bf16.mxu0 0
      %429 = vmatpush1.bf16.msra.mxu0 0
      %430 = vmatprep.subr.bf16.mxu0 0
      %431 = vmatpush1.bf16.msra.mxu0 0
      %432 = vmatprep.subr.bf16.mxu0 0
      %433 = vmatpush1.bf16.msra.mxu0 0
      %434 = vmatprep.subr.bf16.mxu0 0
      %435 = vmatpush1.bf16.msra.mxu0 0
      %436 = vmatprep.subr.bf16.mxu0 0
      %437 = vmatpush1.bf16.msra.mxu0 0
      %438 = vmatprep.subr.bf16.mxu0 0
      %439 = vmatpush1.bf16.msra.mxu0 0
      %440 = vmatprep.subr.bf16.mxu0 0
      %441 = vmatpush1.bf16.msra.mxu0 0
      %442 = vmatprep.mubr.bf16.mxu0 0
      %443 = vmatmul.mubr.bf16.gmra.mrb[0].mxu0 %v359
      %v444 = vpop.f32.mrb[0].mxu0
      %v445 = vadd.f32 0.0, %v444
      %v446 = vpop.f32.mrb[0].mxu0
      %v447 = vpop.f32.mrb[0].mxu0
      %v448 = vadd.f32 0.0, %v447
      %v449 = vpop.f32.mrb[0].mxu0
      %450 = vmatprep.mubr.bf16.mxu0 0
      %451 = vmatmul.mubr.bf16.gmra.mrb[0].mxu0 %v362
      %v452 = vpop.f32.mrb[0].mxu0
      %v453 = vadd.f32 0.0, %v452
      %v454 = vpop.f32.mrb[0].mxu0
      %v455 = vpop.f32.mrb[0].mxu0
      %v456 = vadd.f32 0.0, %v455
      %v457 = vpop.f32.mrb[0].mxu0
      %458 = vmatprep.mubr.bf16.mxu0 0
      %459 = vmatmul.mubr.bf16.gmra.mrb[0].mxu0 %v365
      %v460 = vpop.f32.mrb[0].mxu0
      %v461 = vadd.f32 0.0, %v460
      %v462 = vpop.f32.mrb[0].mxu0
      %v463 = vpop.f32.mrb[0].mxu0
      %v464 = vadd.f32 0.0, %v463
      %v465 = vpop.f32.mrb[0].mxu0
      %466 = vmatprep.mubr.bf16.mxu0 0
      %467 = vmatmul.mubr.bf16.gmra.mrb[0].mxu0 %v368
      %v468 = vpop.f32.mrb[0].mxu0
      %v469 = vadd.f32 0.0, %v468
      %v470 = vpop.f32.mrb[0].mxu0
      %v471 = vpop.f32.mrb[0].mxu0
      %v472 = vadd.f32 0.0, %v471
      %v473 = vpop.f32.mrb[0].mxu0
      %474 = vmatprep.mubr.bf16.mxu0 0
      %475 = vmatmul.mubr.bf16.gmra.mrb[0].mxu0 %v371
      %v476 = vpop.f32.mrb[0].mxu0
      %v477 = vadd.f32 0.0, %v476
      %v478 = vpop.f32.mrb[0].mxu0
      %v479 = vpop.f32.mrb[0].mxu0
      %v480 = vadd.f32 0.0, %v479
      %v481 = vpop.f32.mrb[0].mxu0
      %482 = vmatprep.mubr.bf16.mxu0 0
      %483 = vmatmul.mubr.bf16.gmra.mrb[0].mxu0 %v374
      %v484 = vpop.f32.mrb[0].mxu0
      %v485 = vadd.f32 0.0, %v484
      %v486 = vpop.f32.mrb[0].mxu0
      %v487 = vpop.f32.mrb[0].mxu0
      %v488 = vadd.f32 0.0, %v487
      %v489 = vpop.f32.mrb[0].mxu0
      %490 = vmatprep.mubr.bf16.mxu0 0
      %491 = vmatmul.mubr.bf16.gmra.mrb[0].mxu0 %v377
      %v492 = vpop.f32.mrb[0].mxu0
      %v493 = vadd.f32 0.0, %v492
      %v494 = vpop.f32.mrb[0].mxu0
      %v495 = vpop.f32.mrb[0].mxu0
      %v496 = vadd.f32 0.0, %v495
      %v497 = vpop.f32.mrb[0].mxu0
      %498 = vmatprep.mubr.bf16.mxu0 0
      %499 = vmatmul.mubr.bf16.gmra.mrb[0].mxu0 %v380
      %v500 = vpop.f32.mrb[0].mxu0
      %v501 = vadd.f32 0.0, %v500
      %v502 = vpop.f32.mrb[0].mxu0
      %v503 = vpop.f32.mrb[0].mxu0
      %v504 = vadd.f32 0.0, %v503
      %v505 = vpop.f32.mrb[0].mxu0
      %506 = vmatprep.mubr.bf16.mxu0 0
      %507 = vmatmul.mubr.bf16.gmra.mrb[0].mxu0 %v383
      %v508 = vpop.f32.mrb[0].mxu0
      %v509 = vadd.f32 0.0, %v508
      %v510 = vpop.f32.mrb[0].mxu0
      %v511 = vpop.f32.mrb[0].mxu0
      %v512 = vadd.f32 0.0, %v511
      %v513 = vpop.f32.mrb[0].mxu0
      %514 = vmatprep.mubr.bf16.mxu0 0
      %515 = vmatmul.mubr.bf16.gmra.mrb[0].mxu0 %v386
      %v516 = vpop.f32.mrb[0].mxu0
      %v517 = vadd.f32 0.0, %v516
      %v518 = vpop.f32.mrb[0].mxu0
      %v519 = vpop.f32.mrb[0].mxu0
      %v520 = vadd.f32 0.0, %v519
      %v521 = vpop.f32.mrb[0].mxu0
      %522 = vmatprep.mubr.bf16.mxu0 0
      %523 = vmatmul.mubr.bf16.gmra.mrb[0].mxu0 %v389
      %v524 = vpop.f32.mrb[0].mxu0
      %v525 = vadd.f32 0.0, %v524
      %v526 = vpop.f32.mrb[0].mxu0
      %v527 = vpop.f32.mrb[0].mxu0
      %v528 = vadd.f32 0.0, %v527
      %v529 = vpop.f32.mrb[0].mxu0
      %530 = vmatprep.mubr.bf16.mxu0 0
      %531 = vmatmul.mubr.bf16.gmra.mrb[0].mxu0 %v392
      %v532 = vpop.f32.mrb[0].mxu0
      %v533 = vadd.f32 0.0, %v532
      %v534 = vpop.f32.mrb[0].mxu0
      %v535 = vpop.f32.mrb[0].mxu0
      %v536 = vadd.f32 0.0, %v535
      %v537 = vpop.f32.mrb[0].mxu0
      %538 = vmatprep.mubr.bf16.mxu0 0
      %539 = vmatmul.mubr.bf16.gmra.mrb[0].mxu0 %v395
      %v540 = vpop.f32.mrb[0].mxu0
      %v541 = vadd.f32 0.0, %v540
      %v542 = vpop.f32.mrb[0].mxu0
      %v543 = vpop.f32.mrb[0].mxu0
      %v544 = vadd.f32 0.0, %v543
      %v545 = vpop.f32.mrb[0].mxu0
      %546 = vmatprep.mubr.bf16.mxu0 0
      %547 = vmatmul.mubr.bf16.gmra.mrb[0].mxu0 %v398
      %v548 = vpop.f32.mrb[0].mxu0
      %v549 = vadd.f32 0.0, %v548
      %v550 = vpop.f32.mrb[0].mxu0
      %v551 = vpop.f32.mrb[0].mxu0
      %v552 = vadd.f32 0.0, %v551
      %v553 = vpop.f32.mrb[0].mxu0
      %554 = vmatprep.mubr.bf16.mxu0 0
      %555 = vmatmul.mubr.bf16.gmra.mrb[0].mxu0 %v401
      %v556 = vpop.f32.mrb[0].mxu0
      %v557 = vadd.f32 0.0, %v556
      %v558 = vpop.f32.mrb[0].mxu0
      %v559 = vpop.f32.mrb[0].mxu0
      %v560 = vadd.f32 0.0, %v559
      %v561 = vpop.f32.mrb[0].mxu0
      %562 = vmatprep.mubr.bf16.mxu0 0
      %563 = vmatmul.mubr.bf16.gmra.mrb[0].mxu0 %v404
      %v564 = vpop.f32.mrb[0].mxu0
      %v565 = vadd.f32 0.0, %v564
      %v566 = vpop.f32.mrb[0].mxu0
      %v567 = vpop.f32.mrb[0].mxu0
      %v568 = vadd.f32 0.0, %v567
      %v569 = vpop.f32.mrb[0].mxu0
      %570 = vdwg.mxu0
      %v603 = vunpack.c.l.b16 %v199
      %v604 = vunpack.c.l.b16 %v200
      %v605 = vunpack.c.l.b16 %v201
      %v606 = vunpack.c.l.b16 %v202
      %v607 = vunpack.c.l.b16 %v203
      %v608 = vunpack.c.l.b16 %v204
      %v609 = vunpack.c.l.b16 %v205
      %v610 = vunpack.c.l.b16 %v206
      %v611 = vunpack.c.l.b16 %v207
      %v612 = vunpack.c.l.b16 %v208
      %v613 = vunpack.c.l.b16 %v209
      %v614 = vunpack.c.l.b16 %v210
      %v615 = vunpack.c.l.b16 %v211
      %v616 = vunpack.c.l.b16 %v212
      %v617 = vunpack.c.l.b16 %v213
      %v618 = vunpack.c.l.b16 %v214
      %v619 = vunpack.c.l.b16 %v215
      %v620 = vunpack.c.l.b16 %v216
      %v621 = vunpack.c.l.b16 %v217
      %v622 = vunpack.c.l.b16 %v218
      %v623 = vunpack.c.l.b16 %v219
      %v624 = vunpack.c.l.b16 %v220
      %v625 = vunpack.c.l.b16 %v221
      %v626 = vunpack.c.l.b16 %v222
      %v627 = vunpack.c.l.b16 %v223
      %v628 = vunpack.c.l.b16 %v224
      %v629 = vunpack.c.l.b16 %v225
      %v630 = vunpack.c.l.b16 %v226
      %v631 = vunpack.c.l.b16 %v227
      %v632 = vunpack.c.l.b16 %v228
      %v633 = vunpack.c.l.b16 %v229
      %v634 = vunpack.c.l.b16 %v230
      %v635 = vpack.c.b16 %v604, %v603
      %v636 = vpack.c.b16 %v606, %v605
      %v637 = vpack.c.b16 %v608, %v607
      %v638 = vpack.c.b16 %v610, %v609
      %v639 = vpack.c.b16 %v612, %v611
      %v640 = vpack.c.b16 %v614, %v613
      %v641 = vpack.c.b16 %v616, %v615
      %v642 = vpack.c.b16 %v618, %v617
      %v643 = vpack.c.b16 %v620, %v619
      %v644 = vpack.c.b16 %v622, %v621
      %v645 = vpack.c.b16 %v624, %v623
      %v646 = vpack.c.b16 %v626, %v625
      %v647 = vpack.c.b16 %v628, %v627
      %v648 = vpack.c.b16 %v630, %v629
      %v649 = vpack.c.b16 %v632, %v631
      %v650 = vpack.c.b16 %v634, %v633
      %v653 = vunpack.c.l.b16 %v231
      %v654 = vunpack.c.l.b16 %v232
      %v655 = vpack.c.b16 %v654, %v653
      %v657 = vsel %vm357, %v635, 0
      %v660 = vsel %vm357, %v636, 0
      %v663 = vsel %vm357, %v637, 0
      %v666 = vsel %vm357, %v638, 0
      %v669 = vsel %vm357, %v639, 0
      %v672 = vsel %vm357, %v640, 0
      %v675 = vsel %vm357, %v641, 0
      %v678 = vsel %vm357, %v642, 0
      %v681 = vsel %vm357, %v643, 0
      %v684 = vsel %vm357, %v644, 0
      %v687 = vsel %vm357, %v645, 0
      %v690 = vsel %vm357, %v646, 0
      %v693 = vsel %vm357, %v647, 0
      %v696 = vsel %vm357, %v648, 0
      %v699 = vsel %vm357, %v649, 0
      %v702 = vsel %vm357, %v650, 0
      %v705 = vsel %vm406, %v655, 0
      %707 = vmatprep.subr.bf16.mxu0 0
      %708 = vmatpush1.bf16.msra.mxu0 %v705
      %709 = vmatprep.subr.bf16.mxu0 0
      %710 = vmatpush1.bf16.msra.mxu0 0
      %711 = vmatprep.subr.bf16.mxu0 0
      %712 = vmatpush1.bf16.msra.mxu0 0
      %713 = vmatprep.subr.bf16.mxu0 0
      %714 = vmatpush1.bf16.msra.mxu0 0
      %715 = vmatprep.subr.bf16.mxu0 0
      %716 = vmatpush1.bf16.msra.mxu0 0
      %717 = vmatprep.subr.bf16.mxu0 0
      %718 = vmatpush1.bf16.msra.mxu0 0
      %719 = vmatprep.subr.bf16.mxu0 0
      %720 = vmatpush1.bf16.msra.mxu0 0
      %721 = vmatprep.subr.bf16.mxu0 0
      %722 = vmatpush1.bf16.msra.mxu0 0
      %723 = vmatprep.subr.bf16.mxu0 0
      %724 = vmatpush1.bf16.msra.mxu0 0
      %725 = vmatprep.subr.bf16.mxu0 0
      %726 = vmatpush1.bf16.msra.mxu0 0
      %727 = vmatprep.subr.bf16.mxu0 0
      %728 = vmatpush1.bf16.msra.mxu0 0
      %729 = vmatprep.subr.bf16.mxu0 0
      %730 = vmatpush1.bf16.msra.mxu0 0
      %731 = vmatprep.subr.bf16.mxu0 0
      %732 = vmatpush1.bf16.msra.mxu0 0
      %733 = vmatprep.subr.bf16.mxu0 0
      %734 = vmatpush1.bf16.msra.mxu0 0
      %735 = vmatprep.subr.bf16.mxu0 0
      %736 = vmatpush1.bf16.msra.mxu0 0
      %737 = vmatprep.subr.bf16.mxu0 0
      %738 = vmatpush1.bf16.msra.mxu0 0
      %739 = vmatprep.mubr.bf16.mxu0 0
      %740 = vmatmul.mubr.bf16.gmra.mrb[0].mxu0 %v657
      %v741 = vpop.f32.mrb[0].mxu0
      %v742 = vadd.f32 %v445, %v741
      %v743 = vpop.f32.mrb[0].mxu0
      %v744 = vpop.f32.mrb[0].mxu0
      %v745 = vadd.f32 %v448, %v744
      %v746 = vpop.f32.mrb[0].mxu0
      %747 = vmatprep.mubr.bf16.mxu0 0
      %748 = vmatmul.mubr.bf16.gmra.mrb[0].mxu0 %v660
      %v749 = vpop.f32.mrb[0].mxu0
      %v750 = vadd.f32 %v453, %v749
      %v751 = vpop.f32.mrb[0].mxu0
      %v752 = vpop.f32.mrb[0].mxu0
      %v753 = vadd.f32 %v456, %v752
      %v754 = vpop.f32.mrb[0].mxu0
      %755 = vmatprep.mubr.bf16.mxu0 0
      %756 = vmatmul.mubr.bf16.gmra.mrb[0].mxu0 %v663
      %v757 = vpop.f32.mrb[0].mxu0
      %v758 = vadd.f32 %v461, %v757
      %v759 = vpop.f32.mrb[0].mxu0
      %v760 = vpop.f32.mrb[0].mxu0
      %v761 = vadd.f32 %v464, %v760
      %v762 = vpop.f32.mrb[0].mxu0
      %763 = vmatprep.mubr.bf16.mxu0 0
      %764 = vmatmul.mubr.bf16.gmra.mrb[0].mxu0 %v666
      %v765 = vpop.f32.mrb[0].mxu0
      %v766 = vadd.f32 %v469, %v765
      %v767 = vpop.f32.mrb[0].mxu0
      %v768 = vpop.f32.mrb[0].mxu0
      %v769 = vadd.f32 %v472, %v768
      %v770 = vpop.f32.mrb[0].mxu0
      %771 = vmatprep.mubr.bf16.mxu0 0
      %772 = vmatmul.mubr.bf16.gmra.mrb[0].mxu0 %v669
      %v773 = vpop.f32.mrb[0].mxu0
      %v774 = vadd.f32 %v477, %v773
      %v775 = vpop.f32.mrb[0].mxu0
      %v776 = vpop.f32.mrb[0].mxu0
      %v777 = vadd.f32 %v480, %v776
      %v778 = vpop.f32.mrb[0].mxu0
      %779 = vmatprep.mubr.bf16.mxu0 0
      %780 = vmatmul.mubr.bf16.gmra.mrb[0].mxu0 %v672
      %v781 = vpop.f32.mrb[0].mxu0
      %v782 = vadd.f32 %v485, %v781
      %v783 = vpop.f32.mrb[0].mxu0
      %v784 = vpop.f32.mrb[0].mxu0
      %v785 = vadd.f32 %v488, %v784
      %v786 = vpop.f32.mrb[0].mxu0
      %787 = vmatprep.mubr.bf16.mxu0 0
      %788 = vmatmul.mubr.bf16.gmra.mrb[0].mxu0 %v675
      %v789 = vpop.f32.mrb[0].mxu0
      %v790 = vadd.f32 %v493, %v789
      %v791 = vpop.f32.mrb[0].mxu0
      %v792 = vpop.f32.mrb[0].mxu0
      %v793 = vadd.f32 %v496, %v792
      %v794 = vpop.f32.mrb[0].mxu0
      %795 = vmatprep.mubr.bf16.mxu0 0
      %796 = vmatmul.mubr.bf16.gmra.mrb[0].mxu0 %v678
      %v797 = vpop.f32.mrb[0].mxu0
      %v798 = vadd.f32 %v501, %v797
      %v799 = vpop.f32.mrb[0].mxu0
      %v800 = vpop.f32.mrb[0].mxu0
      %v801 = vadd.f32 %v504, %v800
      %v802 = vpop.f32.mrb[0].mxu0
      %803 = vmatprep.mubr.bf16.mxu0 0
      %804 = vmatmul.mubr.bf16.gmra.mrb[0].mxu0 %v681
      %v805 = vpop.f32.mrb[0].mxu0
      %v806 = vadd.f32 %v509, %v805
      %v807 = vpop.f32.mrb[0].mxu0
      %v808 = vpop.f32.mrb[0].mxu0
      %v809 = vadd.f32 %v512, %v808
      %v810 = vpop.f32.mrb[0].mxu0
      %811 = vmatprep.mubr.bf16.mxu0 0
      %812 = vmatmul.mubr.bf16.gmra.mrb[0].mxu0 %v684
      %v813 = vpop.f32.mrb[0].mxu0
      %v814 = vadd.f32 %v517, %v813
      %v815 = vpop.f32.mrb[0].mxu0
      %v816 = vpop.f32.mrb[0].mxu0
      %v817 = vadd.f32 %v520, %v816
      %v818 = vpop.f32.mrb[0].mxu0
      %819 = vmatprep.mubr.bf16.mxu0 0
      %820 = vmatmul.mubr.bf16.gmra.mrb[0].mxu0 %v687
      %v821 = vpop.f32.mrb[0].mxu0
      %v822 = vadd.f32 %v525, %v821
      %v823 = vpop.f32.mrb[0].mxu0
      %v824 = vpop.f32.mrb[0].mxu0
      %v825 = vadd.f32 %v528, %v824
      %v826 = vpop.f32.mrb[0].mxu0
      %827 = vmatprep.mubr.bf16.mxu0 0
      %828 = vmatmul.mubr.bf16.gmra.mrb[0].mxu0 %v690
      %v829 = vpop.f32.mrb[0].mxu0
      %v830 = vadd.f32 %v533, %v829
      %v831 = vpop.f32.mrb[0].mxu0
      %v832 = vpop.f32.mrb[0].mxu0
      %v833 = vadd.f32 %v536, %v832
      %v834 = vpop.f32.mrb[0].mxu0
      %835 = vmatprep.mubr.bf16.mxu0 0
      %836 = vmatmul.mubr.bf16.gmra.mrb[0].mxu0 %v693
      %v837 = vpop.f32.mrb[0].mxu0
      %v838 = vadd.f32 %v541, %v837
      %v839 = vpop.f32.mrb[0].mxu0
      %v840 = vpop.f32.mrb[0].mxu0
      %v841 = vadd.f32 %v544, %v840
      %v842 = vpop.f32.mrb[0].mxu0
      %843 = vmatprep.mubr.bf16.mxu0 0
      %844 = vmatmul.mubr.bf16.gmra.mrb[0].mxu0 %v696
      %v845 = vpop.f32.mrb[0].mxu0
      %v846 = vadd.f32 %v549, %v845
      %v847 = vpop.f32.mrb[0].mxu0
      %v848 = vpop.f32.mrb[0].mxu0
      %v849 = vadd.f32 %v552, %v848
      %v850 = vpop.f32.mrb[0].mxu0
      %851 = vmatprep.mubr.bf16.mxu0 0
      %852 = vmatmul.mubr.bf16.gmra.mrb[0].mxu0 %v699
      %v853 = vpop.f32.mrb[0].mxu0
      %v854 = vadd.f32 %v557, %v853
      %v855 = vpop.f32.mrb[0].mxu0
      %v856 = vpop.f32.mrb[0].mxu0
      %v857 = vadd.f32 %v560, %v856
      %v858 = vpop.f32.mrb[0].mxu0
      %859 = vmatprep.mubr.bf16.mxu0 0
      %860 = vmatmul.mubr.bf16.gmra.mrb[0].mxu0 %v702
      %v861 = vpop.f32.mrb[0].mxu0
      %v862 = vadd.f32 %v565, %v861
      %v863 = vpop.f32.mrb[0].mxu0
      %v864 = vpop.f32.mrb[0].mxu0
      %v865 = vadd.f32 %v568, %v864
      %v866 = vpop.f32.mrb[0].mxu0
      %867 = vdwg.mxu0
      %s868 = sadd.s32 %s195, 2
      %s869 = smul.u32 %s868, 2
      %s870 = smul.addr %s869, 4
      %s871 = scalar_lea.vmem %s183, %s870
      %v872 = vld [vmem:[%s871] sm:$0xf]
      %v873 = vld [vmem:[%s871 + $0x4] sm:$0xf]
      %v874 = vld [vmem:[%s871 + $0x8] sm:$0xf]
      %v875 = vld [vmem:[%s871 + $0xc] sm:$0xf]
      %v876 = vld [vmem:[%s871 + $0x10] sm:$0xf]
      %v877 = vld [vmem:[%s871 + $0x14] sm:$0xf]
      %v878 = vld [vmem:[%s871 + $0x18] sm:$0xf]
      %v879 = vld [vmem:[%s871 + $0x1c] sm:$0xf]
      %v880 = vld [vmem:[%s871 + $0x20] sm:$0xf]
      %v881 = vld [vmem:[%s871 + $0x24] sm:$0xf]
      %v882 = vld [vmem:[%s871 + $0x28] sm:$0xf]
      %v883 = vld [vmem:[%s871 + $0x2c] sm:$0xf]
      %v884 = vld [vmem:[%s871 + $0x30] sm:$0xf]
      %v885 = vld [vmem:[%s871 + $0x34] sm:$0xf]
      %v886 = vld [vmem:[%s871 + $0x38] sm:$0xf]
      %v887 = vld [vmem:[%s871 + $0x3c] sm:$0xf]
      %v888 = vld [vmem:[%s871 + $0x40] sm:$0xf]
      %v889 = vld [vmem:[%s871 + $0x44] sm:$0xf]
      %v890 = vld [vmem:[%s871 + $0x48] sm:$0xf]
      %v891 = vld [vmem:[%s871 + $0x4c] sm:$0xf]
      %v892 = vld [vmem:[%s871 + $0x50] sm:$0xf]
      %v893 = vld [vmem:[%s871 + $0x54] sm:$0xf]
      %v894 = vld [vmem:[%s871 + $0x58] sm:$0xf]
      %v895 = vld [vmem:[%s871 + $0x5c] sm:$0xf]
      %v896 = vld [vmem:[%s871 + $0x60] sm:$0xf]
      %v897 = vld [vmem:[%s871 + $0x64] sm:$0xf]
      %v898 = vld [vmem:[%s871 + $0x68] sm:$0xf]
      %v899 = vld [vmem:[%s871 + $0x6c] sm:$0xf]
      %v900 = vld [vmem:[%s871 + $0x70] sm:$0xf]
      %v901 = vld [vmem:[%s871 + $0x74] sm:$0xf]
      %v902 = vld [vmem:[%s871 + $0x78] sm:$0xf]
      %v903 = vld [vmem:[%s871 + $0x7c] sm:$0xf]
      %s904 = scalar_lea.vmem %s1, 16
      %v905 = vld [vmem:[%s904] sm:$0xf]
      %v906 = vld [vmem:[%s904 + $0x4] sm:$0x3]
      %v939 = vunpack.c.l.b16 %v872
      %v940 = vunpack.c.l.b16 %v873
      %v941 = vunpack.c.l.b16 %v874
      %v942 = vunpack.c.l.b16 %v875
      %v943 = vunpack.c.l.b16 %v876
      %v944 = vunpack.c.l.b16 %v877
      %v945 = vunpack.c.l.b16 %v878
      %v946 = vunpack.c.l.b16 %v879
      %v947 = vunpack.c.l.b16 %v880
      %v948 = vunpack.c.l.b16 %v881
      %v949 = vunpack.c.l.b16 %v882
      %v950 = vunpack.c.l.b16 %v883
      %v951 = vunpack.c.l.b16 %v884
      %v952 = vunpack.c.l.b16 %v885
      %v953 = vunpack.c.l.b16 %v886
      %v954 = vunpack.c.l.b16 %v887
      %v955 = vunpack.c.l.b16 %v888
      %v956 = vunpack.c.l.b16 %v889
      %v957 = vunpack.c.l.b16 %v890
      %v958 = vunpack.c.l.b16 %v891
      %v959 = vunpack.c.l.b16 %v892
      %v960 = vunpack.c.l.b16 %v893
      %v961 = vunpack.c.l.b16 %v894
      %v962 = vunpack.c.l.b16 %v895
      %v963 = vunpack.c.l.b16 %v896
      %v964 = vunpack.c.l.b16 %v897
      %v965 = vunpack.c.l.b16 %v898
      %v966 = vunpack.c.l.b16 %v899
      %v967 = vunpack.c.l.b16 %v900
      %v968 = vunpack.c.l.b16 %v901
      %v969 = vunpack.c.l.b16 %v902
      %v970 = vunpack.c.l.b16 %v903
      %v971 = vpack.c.b16 %v940, %v939
      %v972 = vpack.c.b16 %v942, %v941
      %v973 = vpack.c.b16 %v944, %v943
      %v974 = vpack.c.b16 %v946, %v945
      %v975 = vpack.c.b16 %v948, %v947
      %v976 = vpack.c.b16 %v950, %v949
      %v977 = vpack.c.b16 %v952, %v951
      %v978 = vpack.c.b16 %v954, %v953
      %v979 = vpack.c.b16 %v956, %v955
      %v980 = vpack.c.b16 %v958, %v957
      %v981 = vpack.c.b16 %v960, %v959
      %v982 = vpack.c.b16 %v962, %v961
      %v983 = vpack.c.b16 %v964, %v963
      %v984 = vpack.c.b16 %v966, %v965
      %v985 = vpack.c.b16 %v968, %v967
      %v986 = vpack.c.b16 %v970, %v969
      %v989 = vunpack.c.l.b16 %v905
      %v990 = vunpack.c.l.b16 %v906
      %v991 = vpack.c.b16 %v990, %v989
      %v993 = vsel %vm357, %v971, 0
      %v996 = vsel %vm357, %v972, 0
      %v999 = vsel %vm357, %v973, 0
      %v1002 = vsel %vm357, %v974, 0
      %v1005 = vsel %vm357, %v975, 0
      %v1008 = vsel %vm357, %v976, 0
      %v1011 = vsel %vm357, %v977, 0
      %v1014 = vsel %vm357, %v978, 0
      %v1017 = vsel %vm357, %v979, 0
      %v1020 = vsel %vm357, %v980, 0
      %v1023 = vsel %vm357, %v981, 0
      %v1026 = vsel %vm357, %v982, 0
      %v1029 = vsel %vm357, %v983, 0
      %v1032 = vsel %vm357, %v984, 0
      %v1035 = vsel %vm357, %v985, 0
      %v1038 = vsel %vm357, %v986, 0
      %v1041 = vsel %vm406, %v991, 0
      %1043 = vmatprep.subr.bf16.mxu0 0
      %1044 = vmatpush1.bf16.msra.mxu0 %v1041
      %1045 = vmatprep.subr.bf16.mxu0 0
      %1046 = vmatpush1.bf16.msra.mxu0 0
      %1047 = vmatprep.subr.bf16.mxu0 0
      %1048 = vmatpush1.bf16.msra.mxu0 0
      %1049 = vmatprep.subr.bf16.mxu0 0
      %1050 = vmatpush1.bf16.msra.mxu0 0
      %1051 = vmatprep.subr.bf16.mxu0 0
      %1052 = vmatpush1.bf16.msra.mxu0 0
      %1053 = vmatprep.subr.bf16.mxu0 0
      %1054 = vmatpush1.bf16.msra.mxu0 0
      %1055 = vmatprep.subr.bf16.mxu0 0
      %1056 = vmatpush1.bf16.msra.mxu0 0
      %1057 = vmatprep.subr.bf16.mxu0 0
      %1058 = vmatpush1.bf16.msra.mxu0 0
      %1059 = vmatprep.subr.bf16.mxu0 0
      %1060 = vmatpush1.bf16.msra.mxu0 0
      %1061 = vmatprep.subr.bf16.mxu0 0
      %1062 = vmatpush1.bf16.msra.mxu0 0
      %1063 = vmatprep.subr.bf16.mxu0 0
      %1064 = vmatpush1.bf16.msra.mxu0 0
      %1065 = vmatprep.subr.bf16.mxu0 0
      %1066 = vmatpush1.bf16.msra.mxu0 0
      %1067 = vmatprep.subr.bf16.mxu0 0
      %1068 = vmatpush1.bf16.msra.mxu0 0
      %1069 = vmatprep.subr.bf16.mxu0 0
      %1070 = vmatpush1.bf16.msra.mxu0 0
      %1071 = vmatprep.subr.bf16.mxu0 0
      %1072 = vmatpush1.bf16.msra.mxu0 0
      %1073 = vmatprep.subr.bf16.mxu0 0
      %1074 = vmatpush1.bf16.msra.mxu0 0
      %1075 = vmatprep.mubr.bf16.mxu0 0
      %1076 = vmatmul.mubr.bf16.gmra.mrb[0].mxu0 %v993
      %v1077 = vpop.f32.mrb[0].mxu0
      %v1078 = vadd.f32 0.0, %v1077
      %v1079 = vpop.f32.mrb[0].mxu0
      %v1080 = vpop.f32.mrb[0].mxu0
      %v1081 = vadd.f32 0.0, %v1080
      %v1082 = vpop.f32.mrb[0].mxu0
      %1083 = vmatprep.mubr.bf16.mxu0 0
      %1084 = vmatmul.mubr.bf16.gmra.mrb[0].mxu0 %v996
      %v1085 = vpop.f32.mrb[0].mxu0
      %v1086 = vadd.f32 0.0, %v1085
      %v1087 = vpop.f32.mrb[0].mxu0
      %v1088 = vpop.f32.mrb[0].mxu0
      %v1089 = vadd.f32 0.0, %v1088
      %v1090 = vpop.f32.mrb[0].mxu0
      %1091 = vmatprep.mubr.bf16.mxu0 0
      %1092 = vmatmul.mubr.bf16.gmra.mrb[0].mxu0 %v999
      %v1093 = vpop.f32.mrb[0].mxu0
      %v1094 = vadd.f32 0.0, %v1093
      %v1095 = vpop.f32.mrb[0].mxu0
      %v1096 = vpop.f32.mrb[0].mxu0
      %v1097 = vadd.f32 0.0, %v1096
      %v1098 = vpop.f32.mrb[0].mxu0
      %1099 = vmatprep.mubr.bf16.mxu0 0
      %1100 = vmatmul.mubr.bf16.gmra.mrb[0].mxu0 %v1002
      %v1101 = vpop.f32.mrb[0].mxu0
      %v1102 = vadd.f32 0.0, %v1101
      %v1103 = vpop.f32.mrb[0].mxu0
      %v1104 = vpop.f32.mrb[0].mxu0
      %v1105 = vadd.f32 0.0, %v1104
      %v1106 = vpop.f32.mrb[0].mxu0
      %1107 = vmatprep.mubr.bf16.mxu0 0
      %1108 = vmatmul.mubr.bf16.gmra.mrb[0].mxu0 %v1005
      %v1109 = vpop.f32.mrb[0].mxu0
      %v1110 = vadd.f32 0.0, %v1109
      %v1111 = vpop.f32.mrb[0].mxu0
      %v1112 = vpop.f32.mrb[0].mxu0
      %v1113 = vadd.f32 0.0, %v1112
      %v1114 = vpop.f32.mrb[0].mxu0
      %1115 = vmatprep.mubr.bf16.mxu0 0
      %1116 = vmatmul.mubr.bf16.gmra.mrb[0].mxu0 %v1008
      %v1117 = vpop.f32.mrb[0].mxu0
      %v1118 = vadd.f32 0.0, %v1117
      %v1119 = vpop.f32.mrb[0].mxu0
      %v1120 = vpop.f32.mrb[0].mxu0
      %v1121 = vadd.f32 0.0, %v1120
      %v1122 = vpop.f32.mrb[0].mxu0
      %1123 = vmatprep.mubr.bf16.mxu0 0
      %1124 = vmatmul.mubr.bf16.gmra.mrb[0].mxu0 %v1011
      %v1125 = vpop.f32.mrb[0].mxu0
      %v1126 = vadd.f32 0.0, %v1125
      %v1127 = vpop.f32.mrb[0].mxu0
      %v1128 = vpop.f32.mrb[0].mxu0
      %v1129 = vadd.f32 0.0, %v1128
      %v1130 = vpop.f32.mrb[0].mxu0
      %1131 = vmatprep.mubr.bf16.mxu0 0
      %1132 = vmatmul.mubr.bf16.gmra.mrb[0].mxu0 %v1014
      %v1133 = vpop.f32.mrb[0].mxu0
      %v1134 = vadd.f32 0.0, %v1133
      %v1135 = vpop.f32.mrb[0].mxu0
      %v1136 = vpop.f32.mrb[0].mxu0
      %v1137 = vadd.f32 0.0, %v1136
      %v1138 = vpop.f32.mrb[0].mxu0
      %1139 = vmatprep.mubr.bf16.mxu0 0
      %1140 = vmatmul.mubr.bf16.gmra.mrb[0].mxu0 %v1017
      %v1141 = vpop.f32.mrb[0].mxu0
      %v1142 = vadd.f32 0.0, %v1141
      %v1143 = vpop.f32.mrb[0].mxu0
      %v1144 = vpop.f32.mrb[0].mxu0
      %v1145 = vadd.f32 0.0, %v1144
      %v1146 = vpop.f32.mrb[0].mxu0
      %1147 = vmatprep.mubr.bf16.mxu0 0
      %1148 = vmatmul.mubr.bf16.gmra.mrb[0].mxu0 %v1020
      %v1149 = vpop.f32.mrb[0].mxu0
      %v1150 = vadd.f32 0.0, %v1149
      %v1151 = vpop.f32.mrb[0].mxu0
      %v1152 = vpop.f32.mrb[0].mxu0
      %v1153 = vadd.f32 0.0, %v1152
      %v1154 = vpop.f32.mrb[0].mxu0
      %1155 = vmatprep.mubr.bf16.mxu0 0
      %1156 = vmatmul.mubr.bf16.gmra.mrb[0].mxu0 %v1023
      %v1157 = vpop.f32.mrb[0].mxu0
      %v1158 = vadd.f32 0.0, %v1157
      %v1159 = vpop.f32.mrb[0].mxu0
      %v1160 = vpop.f32.mrb[0].mxu0
      %v1161 = vadd.f32 0.0, %v1160
      %v1162 = vpop.f32.mrb[0].mxu0
      %1163 = vmatprep.mubr.bf16.mxu0 0
      %1164 = vmatmul.mubr.bf16.gmra.mrb[0].mxu0 %v1026
      %v1165 = vpop.f32.mrb[0].mxu0
      %v1166 = vadd.f32 0.0, %v1165
      %v1167 = vpop.f32.mrb[0].mxu0
      %v1168 = vpop.f32.mrb[0].mxu0
      %v1169 = vadd.f32 0.0, %v1168
      %v1170 = vpop.f32.mrb[0].mxu0
      %1171 = vmatprep.mubr.bf16.mxu0 0
      %1172 = vmatmul.mubr.bf16.gmra.mrb[0].mxu0 %v1029
      %v1173 = vpop.f32.mrb[0].mxu0
      %v1174 = vadd.f32 0.0, %v1173
      %v1175 = vpop.f32.mrb[0].mxu0
      %v1176 = vpop.f32.mrb[0].mxu0
      %v1177 = vadd.f32 0.0, %v1176
      %v1178 = vpop.f32.mrb[0].mxu0
      %1179 = vmatprep.mubr.bf16.mxu0 0
      %1180 = vmatmul.mubr.bf16.gmra.mrb[0].mxu0 %v1032
      %v1181 = vpop.f32.mrb[0].mxu0
      %v1182 = vadd.f32 0.0, %v1181
      %v1183 = vpop.f32.mrb[0].mxu0
      %v1184 = vpop.f32.mrb[0].mxu0
      %v1185 = vadd.f32 0.0, %v1184
      %v1186 = vpop.f32.mrb[0].mxu0
      %1187 = vmatprep.mubr.bf16.mxu0 0
      %1188 = vmatmul.mubr.bf16.gmra.mrb[0].mxu0 %v1035
      %v1189 = vpop.f32.mrb[0].mxu0
      %v1190 = vadd.f32 0.0, %v1189
      %v1191 = vpop.f32.mrb[0].mxu0
      %v1192 = vpop.f32.mrb[0].mxu0
      %v1193 = vadd.f32 0.0, %v1192
      %v1194 = vpop.f32.mrb[0].mxu0
      %1195 = vmatprep.mubr.bf16.mxu0 0
      %1196 = vmatmul.mubr.bf16.gmra.mrb[0].mxu0 %v1038
      %v1197 = vpop.f32.mrb[0].mxu0
      %v1198 = vadd.f32 0.0, %v1197
      %v1199 = vpop.f32.mrb[0].mxu0
      %v1200 = vpop.f32.mrb[0].mxu0
      %v1201 = vadd.f32 0.0, %v1200
      %v1202 = vpop.f32.mrb[0].mxu0
      %1203 = vdwg.mxu0
      %v1204 = vadd.f32 %v742, %v1078
      %v1205 = vadd.f32 %v745, %v1081
      %v1206 = vadd.f32 %v750, %v1086
      %v1207 = vadd.f32 %v753, %v1089
      %v1208 = vadd.f32 %v758, %v1094
      %v1209 = vadd.f32 %v761, %v1097
      %v1210 = vadd.f32 %v766, %v1102
      %v1211 = vadd.f32 %v769, %v1105
      %v1212 = vadd.f32 %v774, %v1110
      %v1213 = vadd.f32 %v777, %v1113
      %v1214 = vadd.f32 %v782, %v1118
      %v1215 = vadd.f32 %v785, %v1121
      %v1216 = vadd.f32 %v790, %v1126
      %v1217 = vadd.f32 %v793, %v1129
      %v1218 = vadd.f32 %v798, %v1134
      %v1219 = vadd.f32 %v801, %v1137
      %v1220 = vadd.f32 %v806, %v1142
      %v1221 = vadd.f32 %v809, %v1145
      %v1222 = vadd.f32 %v814, %v1150
      %v1223 = vadd.f32 %v817, %v1153
      %v1224 = vadd.f32 %v822, %v1158
      %v1225 = vadd.f32 %v825, %v1161
      %v1226 = vadd.f32 %v830, %v1166
      %v1227 = vadd.f32 %v833, %v1169
      %v1228 = vadd.f32 %v838, %v1174
      %v1229 = vadd.f32 %v841, %v1177
      %v1230 = vadd.f32 %v846, %v1182
      %v1231 = vadd.f32 %v849, %v1185
      %v1232 = vadd.f32 %v854, %v1190
      %v1233 = vadd.f32 %v857, %v1193
      %v1234 = vadd.f32 %v862, %v1198
      %v1235 = vadd.f32 %v865, %v1201
      %v1236 = vld [vmem:[%s2] sm:$0x1]
      %v1238 = vlaneseq
      %v1239 = vshrl.u32 %v1238, 7
      %v1240 = vsub.s32 0, %v1239
      %v1241 = vrot.slane %v1236, %v1240
      %v1243 = vadd.f32 %v1204, %v1241
      %v1244 = vadd.f32 %v1205, %v1241
      %v1245 = vadd.f32 %v1206, %v1241
      %v1246 = vadd.f32 %v1207, %v1241
      %v1247 = vadd.f32 %v1208, %v1241
      %v1248 = vadd.f32 %v1209, %v1241
      %v1249 = vadd.f32 %v1210, %v1241
      %v1250 = vadd.f32 %v1211, %v1241
      %v1251 = vadd.f32 %v1212, %v1241
      %v1252 = vadd.f32 %v1213, %v1241
      %v1253 = vadd.f32 %v1214, %v1241
      %v1254 = vadd.f32 %v1215, %v1241
      %v1255 = vadd.f32 %v1216, %v1241
      %v1256 = vadd.f32 %v1217, %v1241
      %v1257 = vadd.f32 %v1218, %v1241
      %v1258 = vadd.f32 %v1219, %v1241
      %v1259 = vadd.f32 %v1220, %v1241
      %v1260 = vadd.f32 %v1221, %v1241
      %v1261 = vadd.f32 %v1222, %v1241
      %v1262 = vadd.f32 %v1223, %v1241
      %v1263 = vadd.f32 %v1224, %v1241
      %v1264 = vadd.f32 %v1225, %v1241
      %v1265 = vadd.f32 %v1226, %v1241
      %v1266 = vadd.f32 %v1227, %v1241
      %v1267 = vadd.f32 %v1228, %v1241
      %v1268 = vadd.f32 %v1229, %v1241
      %v1269 = vadd.f32 %v1230, %v1241
      %v1270 = vadd.f32 %v1231, %v1241
      %v1271 = vadd.f32 %v1232, %v1241
      %v1272 = vadd.f32 %v1233, %v1241
      %v1273 = vadd.f32 %v1234, %v1241
      %v1274 = vadd.f32 %v1235, %v1241
      %v1275 = vmax.f32 %v1243, 0.0
      %v1276 = vmax.f32 %v1244, 0.0
      %v1277 = vmax.f32 %v1245, 0.0
      %v1278 = vmax.f32 %v1246, 0.0
      %v1279 = vmax.f32 %v1247, 0.0
      %v1280 = vmax.f32 %v1248, 0.0
      %v1281 = vmax.f32 %v1249, 0.0
      %v1282 = vmax.f32 %v1250, 0.0
      %v1283 = vmax.f32 %v1251, 0.0
      %v1284 = vmax.f32 %v1252, 0.0
      %v1285 = vmax.f32 %v1253, 0.0
      %v1286 = vmax.f32 %v1254, 0.0
      %v1287 = vmax.f32 %v1255, 0.0
      %v1288 = vmax.f32 %v1256, 0.0
      %v1289 = vmax.f32 %v1257, 0.0
      %v1290 = vmax.f32 %v1258, 0.0
      %v1291 = vmax.f32 %v1259, 0.0
      %v1292 = vmax.f32 %v1260, 0.0
      %v1293 = vmax.f32 %v1261, 0.0
      %v1294 = vmax.f32 %v1262, 0.0
      %v1295 = vmax.f32 %v1263, 0.0
      %v1296 = vmax.f32 %v1264, 0.0
      %v1297 = vmax.f32 %v1265, 0.0
      %v1298 = vmax.f32 %v1266, 0.0
      %v1299 = vmax.f32 %v1267, 0.0
      %v1300 = vmax.f32 %v1268, 0.0
      %v1301 = vmax.f32 %v1269, 0.0
      %v1302 = vmax.f32 %v1270, 0.0
      %v1303 = vmax.f32 %v1271, 0.0
      %v1304 = vmax.f32 %v1272, 0.0
      %v1305 = vmax.f32 %v1273, 0.0
      %v1306 = vmax.f32 %v1274, 0.0
      %vm1307 = vcmask 64512
      %1308 = vst.msk [vmem:[%s192] sm:$0xff] %vm1307, %v1275
      %1309 = vst.msk [vmem:[%s192 + $0x8] sm:$0xff] %vm1307, %v1276
      %1310 = vst.msk [vmem:[%s192 + $0x10] sm:$0xff] %vm1307, %v1277
      %1311 = vst.msk [vmem:[%s192 + $0x18] sm:$0xff] %vm1307, %v1278
      %1312 = vst.msk [vmem:[%s192 + $0x20] sm:$0xff] %vm1307, %v1279
      %1313 = vst.msk [vmem:[%s192 + $0x28] sm:$0xff] %vm1307, %v1280
      %1314 = vst.msk [vmem:[%s192 + $0x30] sm:$0xff] %vm1307, %v1281
      %1315 = vst.msk [vmem:[%s192 + $0x38] sm:$0xff] %vm1307, %v1282
      %1316 = vst.msk [vmem:[%s192 + $0x40] sm:$0xff] %vm1307, %v1283
      %1317 = vst.msk [vmem:[%s192 + $0x48] sm:$0xff] %vm1307, %v1284
      %1318 = vst.msk [vmem:[%s192 + $0x50] sm:$0xff] %vm1307, %v1285
      %1319 = vst.msk [vmem:[%s192 + $0x58] sm:$0xff] %vm1307, %v1286
      %1320 = vst.msk [vmem:[%s192 + $0x60] sm:$0xff] %vm1307, %v1287
      %1321 = vst.msk [vmem:[%s192 + $0x68] sm:$0xff] %vm1307, %v1288
      %1322 = vst.msk [vmem:[%s192 + $0x70] sm:$0xff] %vm1307, %v1289
      %1323 = vst.msk [vmem:[%s192 + $0x78] sm:$0xff] %vm1307, %v1290
      %1324 = vst.msk [vmem:[%s192 + $0x80] sm:$0xff] %vm1307, %v1291
      %1325 = vst.msk [vmem:[%s192 + $0x88] sm:$0xff] %vm1307, %v1292
      %1326 = vst.msk [vmem:[%s192 + $0x90] sm:$0xff] %vm1307, %v1293
      %1327 = vst.msk [vmem:[%s192 + $0x98] sm:$0xff] %vm1307, %v1294
      %1328 = vst.msk [vmem:[%s192 + $0xa0] sm:$0xff] %vm1307, %v1295
      %1329 = vst.msk [vmem:[%s192 + $0xa8] sm:$0xff] %vm1307, %v1296
      %1330 = vst.msk [vmem:[%s192 + $0xb0] sm:$0xff] %vm1307, %v1297
      %1331 = vst.msk [vmem:[%s192 + $0xb8] sm:$0xff] %vm1307, %v1298
      %1332 = vst.msk [vmem:[%s192 + $0xc0] sm:$0xff] %vm1307, %v1299
      %1333 = vst.msk [vmem:[%s192 + $0xc8] sm:$0xff] %vm1307, %v1300
      %1334 = vst.msk [vmem:[%s192 + $0xd0] sm:$0xff] %vm1307, %v1301
      %1335 = vst.msk [vmem:[%s192 + $0xd8] sm:$0xff] %vm1307, %v1302
      %1336 = vst.msk [vmem:[%s192 + $0xe0] sm:$0xff] %vm1307, %v1303
      %1337 = vst.msk [vmem:[%s192 + $0xe8] sm:$0xff] %vm1307, %v1304
      %1338 = vst.msk [vmem:[%s192 + $0xf0] sm:$0xff] %vm1307, %v1305
      %1339 = vst.msk [vmem:[%s192 + $0xf8] sm:$0xff] %vm1307, %v1306
      %s1340 = smul.u32 32, %s19
      %p1341 = scmp.lt.s32.totalorder %s18, 1
      %s1342 = scalar_select %p1341, %s18, 1
      %p1343 = scmp.lt.s32.totalorder %s1340, 31
      %s1344 = scalar_select %p1343, %s1340, 31
      %s1345 = smul.addr %s1342, 32
      %s1346 = sadd.s32 %s1344, %s1345
      %s1347 = smul.addr %s1346, 8
      %s1348 = scalar_lea.vmem %s3, %s1347
      // Predicated region
      $region33: #{tpu_custom_call.1} parent=31 // pred_check
        %p1349 = pneg %p114
      $region34: #{tpu_custom_call.1} parent=31 // pred_check_branch
        %1351 = sbr.rel (%p1349) target = $region36
      $region35: #{tpu_custom_call.1} parent=31 // pred_region
        %s1352 = smul.u32 32, %s19
      $region36: #{tpu_custom_call.1} parent=31 // pred_fallthru
        _
    $region32: #{tpu_custom_call.1} parent=5 // pred_fallthru
      _
    %p1353 = scmp.le.s32.totalorder 2, %s9
    // Predicated region
    $region37: #{tpu_custom_call.1} parent=5 // pred_check
      %p1354 = pneg %p1353
    $region38: #{tpu_custom_call.1} parent=5 // pred_check_branch
      %1356 = sbr.rel (%p1354) target = $region40
    $region39: #{tpu_custom_call.1} parent=5 // pred_region
      %s1357 = ssub.s32 %s9, 2
      // Predicated region
      $region41: #{tpu_custom_call.1} parent=39 // pred_check
        %p1358 = pneg %p120
      $region42: #{tpu_custom_call.1} parent=39 // pred_check_branch
        %1360 = sbr.rel (%p1358) target = $region44
      $region43: #{tpu_custom_call.1} parent=39 // pred_region
        %s1361 = smul.u32 32, %s21
        %p1362 = scmp.lt.s32.totalorder %s20, 1
        %s1363 = scalar_select %p1362, %s20, 1
        %p1364 = scmp.lt.s32.totalorder %s1361, 31
        %s1365 = scalar_select %p1364, %s1361, 31
        %s1366 = smul.addr %s1363, 32
        %s1367 = sadd.s32 %s1365, %s1366
        %s1368 = smul.addr %s1367, 8
        %s1369 = scalar_lea.vmem %s3, %s1368
      $region44: #{tpu_custom_call.1} parent=39 // pred_fallthru
        _
    $region40: #{tpu_custom_call.1} parent=5 // pred_fallthru
      _
  $region6: #{tpu_custom_call.1} parent=0 // loop_footer
    %s13 = sadd.s32 1, %s9
  $region7: #{tpu_custom_call.1} parent=0 // loop_footer_branch
    %8 = sbr.rel target = $region3
  $region8: #{tpu_custom_call.1} parent=0 // loop_exit
    _

// kernel: tpu_custom_call.1
$region0: #{tpu_custom_call.1}
  #allocation0 [shape = 'u32[]', space=smem, size = 0x4, offset = 0x4, fixed_abs, tag = 'smem constant byte address 0x4 - core index']
  #allocation1 [shape = 'u32[144,128]{1,0:T(1,128)}', space=vmem, size = 0x12000, scoped, tag = 'internal scratch']
  %s0 = inlined_call_operand.vmem [shape: bf16[2,18,16,12], index: 0, kind: input, shape index: {}]
  %s1 = inlined_call_operand.vmem [shape: bf16[3,12,8], index: 1, kind: input, shape index: {}]
  %s2 = inlined_call_operand.vmem [shape: f32[1,8], index: 2, kind: input, shape index: {}]
  %s3 = inlined_call_operand.vmem [shape: f32[2,256,8], index: 3, kind: output, shape index: {}]
  %s4 = sld [smem:[#allocation0]]
  $region45: #{tpu_custom_call.1} parent=0
    _
  %s6 = ssub.s32 1, %s4
  %s7 = scalar_select 0, %s6, %s4
  loop: start=0, step=1, limit=4
  $region2: #{tpu_custom_call.1} parent=0 // loop_pre_header
    _
  $region3: #{tpu_custom_call.1} parent=0 // loop_header
    %s9 = sphi 0, %s13
    %p10 = scmp.ge.s32.totalorder %s9, 4
    %s16 = sphi 0, %s28
    %s17 = sphi 0, %s24
    %s18 = sphi 0, %s16
    %s19 = sphi 0, %s17
    %s20 = sphi 0, %s18
    %s21 = sphi 0, %s19
    %s31 = sphi 0, %s33
    %s34 = sphi 0, %s31
    %s35 = sphi 0, %s34
    %s51 = sphi 0, %s35
    %s55 = sphi 0, %s55
    %s57 = sphi 0, %s55
    %s58 = sphi 0, %s57
    %s72 = sphi 0, %s58
    %s76 = sphi 0, %s76
    %s78 = sphi 0, %s76
    %s79 = sphi 0, %s78
    %s93 = sphi 0, %s79
    %s101 = sphi 0, %s103
    %s104 = sphi 0, %s101
    %s105 = sphi 0, %s104
    %s121 = sphi 0, %s105
  $region4: #{tpu_custom_call.1} parent=0 // loop_header_branch
    %12 = sbr.rel (%p10) target = $region8
  $region5: #{tpu_custom_call.1} parent=0 // loop_body
    %s14 = ssub.s32 %s9, 1
    %s15 = ssub.s32 %s9, 2
    %s22 = sadd.s32 1, %s17
    %p23 = scmp.ge.s32.totalorder %s22, 1
    %s24 = scalar_select %p23, 0, %s22
    %s25 = sadd.s32 1, %s16
    %s26 = scalar_select %p23, %s25, %s16
    %p27 = scmp.ge.s32.totalorder %s26, 2
    %s28 = scalar_select %p27, 0, %s26
    %s29 = ssub.s32 %s16, %s28
    %p30 = scmp.eq.s32.totalorder %s29, 0
    %s32 = sadd.s32 %s31, 1
    %s33 = scalar_select %p30, %s31, %s32
    %p36 = pneg %p30
    %p37 = scmp.eq.s32.totalorder %s9, 1
    %p38 = por %p36, %p37
    %p39 = scmp.ne.s32.totalorder %s31, %s34
    %p40 = scmp.eq.s32.totalorder %s9, 0
    %p41 = por %p39, %p40
    %p42 = scmp.ne.s32.totalorder %s31, %s34
    %p43 = scmp.eq.s32.totalorder %s14, 1
    %p44 = por %p42, %p43
    %p45 = scmp.ne.s32.totalorder %s34, %s35
    %p46 = scmp.eq.s32.totalorder %s14, 0
    %p47 = por %p45, %p46
    %p48 = scmp.ne.s32.totalorder %s34, %s35
    %p49 = scmp.eq.s32.totalorder %s15, 1
    %p50 = por %p48, %p49
    %p52 = scmp.ne.s32.totalorder %s35, %s51
    %p53 = scmp.eq.s32.totalorder %s15, 0
    %p54 = por %p52, %p53
    %s56 = sadd.s32 %s55, 1
    %p59 = scmp.eq.s32.totalorder %s9, 1
    %p60 = scmp.ne.s32.totalorder %s55, %s57
    %p61 = scmp.eq.s32.totalorder %s9, 0
    %p62 = por %p60, %p61
    %p63 = scmp.ne.s32.totalorder %s55, %s57
    %p64 = scmp.eq.s32.totalorder %s14, 1
    %p65 = por %p63, %p64
    %p66 = scmp.ne.s32.totalorder %s57, %s58
    %p67 = scmp.eq.s32.totalorder %s14, 0
    %p68 = por %p66, %p67
    %p69 = scmp.ne.s32.totalorder %s57, %s58
    %p70 = scmp.eq.s32.totalorder %s15, 1
    %p71 = por %p69, %p70
    %p73 = scmp.ne.s32.totalorder %s58, %s72
    %p74 = scmp.eq.s32.totalorder %s15, 0
    %p75 = por %p73, %p74
    %s77 = sadd.s32 %s76, 1
    %p80 = scmp.eq.s32.totalorder %s9, 1
    %p81 = scmp.ne.s32.totalorder %s76, %s78
    %p82 = scmp.eq.s32.totalorder %s9, 0
    %p83 = por %p81, %p82
    %p84 = scmp.ne.s32.totalorder %s76, %s78
    %p85 = scmp.eq.s32.totalorder %s14, 1
    %p86 = por %p84, %p85
    %p87 = scmp.ne.s32.totalorder %s78, %s79
    %p88 = scmp.eq.s32.totalorder %s14, 0
    %p89 = por %p87, %p88
    %p90 = scmp.ne.s32.totalorder %s78, %s79
    %p91 = scmp.eq.s32.totalorder %s15, 1
    %p92 = por %p90, %p91
    %p94 = scmp.ne.s32.totalorder %s79, %s93
    %p95 = scmp.eq.s32.totalorder %s15, 0
    %p96 = por %p94, %p95
    %s97 = ssub.s32 %s16, %s28
    %s98 = ssub.s32 %s17, %s24
    %s99 = sor.u32 %s97, %s98
    %p100 = scmp.eq.s32.totalorder %s99, 0
    %s102 = sadd.s32 %s101, 1
    %s103 = scalar_select %p100, %s101, %s102
    %p106 = pneg %p100
    %p107 = scmp.eq.s32.totalorder %s9, 1
    %p108 = por %p106, %p107
    %p109 = scmp.ne.s32.totalorder %s101, %s104
    %p110 = scmp.eq.s32.totalorder %s9, 0
    %p111 = por %p109, %p110
    %p112 = scmp.ne.s32.totalorder %s101, %s104
    %p113 = scmp.eq.s32.totalorder %s14, 1
    %p114 = por %p112, %p113
    %p115 = scmp.ne.s32.totalorder %s104, %s105
    %p116 = scmp.eq.s32.totalorder %s14, 0
    %p117 = por %p115, %p116
    %p118 = scmp.ne.s32.totalorder %s104, %s105
    %p119 = scmp.eq.s32.totalorder %s15, 1
    %p120 = por %p118, %p119
    %p122 = scmp.ne.s32.totalorder %s105, %s121
    %p123 = scmp.eq.s32.totalorder %s15, 0
    %p124 = por %p122, %p123
    %p125 = scmp.le.s32.totalorder 1, %s9
    %p126 = scmp.lt.s32.totalorder %s9, 3
    %p127 = pnand %p125, %p126
    %p128 = pneg %p127
    // Predicated region
    $region9: #{tpu_custom_call.1} parent=5 // pred_check
      _
    $region10: #{tpu_custom_call.1} parent=5 // pred_check_branch
      %130 = sbr.rel (%p127) target = $region12
    $region11: #{tpu_custom_call.1} parent=5 // pred_region
      %s131 = ssub.s32 %s9, 1
      // Predicated region
      $region13: #{tpu_custom_call.1} parent=11 // pred_check
        %p132 = pneg %p68
      $region14: #{tpu_custom_call.1} parent=11 // pred_check_branch
        %134 = sbr.rel (%p132) target = $region16
      $region15: #{tpu_custom_call.1} parent=11 // pred_region
        _
      $region16: #{tpu_custom_call.1} parent=11 // pred_fallthru
        _
      // Predicated region
      $region17: #{tpu_custom_call.1} parent=11 // pred_check
        %p135 = pneg %p89
      $region18: #{tpu_custom_call.1} parent=11 // pred_check_branch
        %137 = sbr.rel (%p135) target = $region20
      $region19: #{tpu_custom_call.1} parent=11 // pred_region
        _
      $region20: #{tpu_custom_call.1} parent=11 // pred_fallthru
        _
    $region12: #{tpu_custom_call.1} parent=5 // pred_fallthru
      _
    %p138 = scmp.lt.s32.totalorder %s9, 2
    // Predicated region
    $region21: #{tpu_custom_call.1} parent=5 // pred_check
      %p139 = pneg %p138
    $region22: #{tpu_custom_call.1} parent=5 // pred_check_branch
      %141 = sbr.rel (%p139) target = $region24
    $region23: #{tpu_custom_call.1} parent=5 // pred_region
      // Predicated region
      $region25: #{tpu_custom_call.1} parent=23 // pred_check
        %p142 = pneg %p41
      $region26: #{tpu_custom_call.1} parent=23 // pred_check_branch
        %144 = sbr.rel (%p142) target = $region28
      $region27: #{tpu_custom_call.1} parent=23 // pred_region
        %p145 = scmp.lt.s32.totalorder %s16, 1
        %s146 = scalar_select %p145, %s16, 1
        %s147 = smul.addr %s146, 36
        %s148 = smul.addr %s147, 4
        %s149 = scalar_lea.vmem %s0, %s148
      $region28: #{tpu_custom_call.1} parent=23 // pred_fallthru
        _
    $region24: #{tpu_custom_call.1} parent=5 // pred_fallthru
      _
    %p150 = scmp.le.s32.totalorder 1, %s9
    %p151 = scmp.lt.s32.totalorder %s9, 3
    %p152 = pnand %p150, %p151
    %p153 = pneg %p152
    // Predicated region
    $region29: #{tpu_custom_call.1} parent=5 // pred_check
      _
    $region30: #{tpu_custom_call.1} parent=5 // pred_check_branch
      %155 = sbr.rel (%p152) target = $region32
    $region31: #{tpu_custom_call.1} parent=5 // pred_region
      %s156 = ssub.s32 %s9, 1
      %p157 = scmp.lt.s32.totalorder %s18, 1
      %s158 = scalar_select %p157, %s18, 1
      %s159 = smul.addr %s158, 36
      %s160 = smul.addr %s159, 4
      %s161 = scalar_lea.vmem %s0, %s160
      %p162 = pneg %p47
      %p163 = pneg %p44
      %p164 = pneg %p68
      %p165 = pneg %p65
      %p166 = pneg %p89
      %p167 = pneg %p86
      %p168 = pneg %p117
      %p169 = pneg %p114
      %s170 = smul.u32 32, %s19
      %p171 = scmp.lt.s32.totalorder %s18, 1
      %s172 = scalar_select %p171, %s18, 1
      %p173 = scmp.lt.s32.totalorder %s170, 31
      %s174 = scalar_select %p173, %s170, 31
      %s175 = smul.addr %s172, 32
      %s176 = sadd.s32 %s174, %s175
      %s177 = smul.addr %s176, 8
      %s178 = scalar_lea.vmem %s3, %s177
      %p179 = scmp.lt.s32.totalorder %s18, 1
      %s180 = scalar_select %p179, %s18, 1
      %s181 = smul.addr %s180, 36
      %s182 = smul.addr %s181, 4
      %s183 = scalar_lea.vmem %s0, %s182
      %s184 = smul.u32 32, %s19
      %p185 = scmp.lt.s32.totalorder %s18, 1
      %s186 = scalar_select %p185, %s18, 1
      %p187 = scmp.lt.s32.totalorder %s184, 31
      %s188 = scalar_select %p187, %s184, 31
      %s189 = smul.addr %s186, 32
      %s190 = sadd.s32 %s188, %s189
      %s191 = smul.addr %s190, 8
      %s192 = scalar_lea.vmem %s3, %s191
      %s193 = smul.u32 32, %s19
      %s195 = smul.u32 %s19, 16
      %s196 = smul.u32 %s195, 2
      %s197 = smul.addr %s196, 4
      %s198 = scalar_lea.vmem %s183, %s197
      %v199 = vld [vmem:[%s198] sm:$0xf]
      %v200 = vld [vmem:[%s198 + $0x4] sm:$0xf]
      %v201 = vld [vmem:[%s198 + $0x8] sm:$0xf]
      %v202 = vld [vmem:[%s198 + $0xc] sm:$0xf]
      %v203 = vld [vmem:[%s198 + $0x10] sm:$0xf]
      %v204 = vld [vmem:[%s198 + $0x14] sm:$0xf]
      %v205 = vld [vmem:[%s198 + $0x18] sm:$0xf]
      %v206 = vld [vmem:[%s198 + $0x1c] sm:$0xf]
      %v207 = vld [vmem:[%s198 + $0x20] sm:$0xf]
      %v208 = vld [vmem:[%s198 + $0x24] sm:$0xf]
      %v209 = vld [vmem:[%s198 + $0x28] sm:$0xf]
      %v210 = vld [vmem:[%s198 + $0x2c] sm:$0xf]
      %v211 = vld [vmem:[%s198 + $0x30] sm:$0xf]
      %v212 = vld [vmem:[%s198 + $0x34] sm:$0xf]
      %v213 = vld [vmem:[%s198 + $0x38] sm:$0xf]
      %v214 = vld [vmem:[%s198 + $0x3c] sm:$0xf]
      %v215 = vld [vmem:[%s198 + $0x40] sm:$0xf]
      %v216 = vld [vmem:[%s198 + $0x44] sm:$0xf]
      %v217 = vld [vmem:[%s198 + $0x48] sm:$0xf]
      %v218 = vld [vmem:[%s198 + $0x4c] sm:$0xf]
      %v219 = vld [vmem:[%s198 + $0x50] sm:$0xf]
      %v220 = vld [vmem:[%s198 + $0x54] sm:$0xf]
      %v221 = vld [vmem:[%s198 + $0x58] sm:$0xf]
      %v222 = vld [vmem:[%s198 + $0x5c] sm:$0xf]
      %v223 = vld [vmem:[%s198 + $0x60] sm:$0xf]
      %v224 = vld [vmem:[%s198 + $0x64] sm:$0xf]
      %v225 = vld [vmem:[%s198 + $0x68] sm:$0xf]
      %v226 = vld [vmem:[%s198 + $0x6c] sm:$0xf]
      %v227 = vld [vmem:[%s198 + $0x70] sm:$0xf]
      %v228 = vld [vmem:[%s198 + $0x74] sm:$0xf]
      %v229 = vld [vmem:[%s198 + $0x78] sm:$0xf]
      %v230 = vld [vmem:[%s198 + $0x7c] sm:$0xf]
      %v231 = vld [vmem:[%s1] sm:$0xf]
      %v232 = vld [vmem:[%s1 + $0x4] sm:$0x3]
      %s233 = sadd.s32 %s195, 1
      %s234 = smul.u32 %s233, 2
      %s235 = smul.addr %s234, 4
      %s236 = scalar_lea.vmem %s183, %s235
      %v237 = vld [vmem:[%s236] sm:$0xf]
      %v238 = vld [vmem:[%s236 + $0x4] sm:$0xf]
      %v239 = vld [vmem:[%s236 + $0x8] sm:$0xf]
      %v240 = vld [vmem:[%s236 + $0xc] sm:$0xf]
      %v241 = vld [vmem:[%s236 + $0x10] sm:$0xf]
      %v242 = vld [vmem:[%s236 + $0x14] sm:$0xf]
      %v243 = vld [vmem:[%s236 + $0x18] sm:$0xf]
      %v244 = vld [vmem:[%s236 + $0x1c] sm:$0xf]
      %v245 = vld [vmem:[%s236 + $0x20] sm:$0xf]
      %v246 = vld [vmem:[%s236 + $0x24] sm:$0xf]
      %v247 = vld [vmem:[%s236 + $0x28] sm:$0xf]
      %v248 = vld [vmem:[%s236 + $0x2c] sm:$0xf]
      %v249 = vld [vmem:[%s236 + $0x30] sm:$0xf]
      %v250 = vld [vmem:[%s236 + $0x34] sm:$0xf]
      %v251 = vld [vmem:[%s236 + $0x38] sm:$0xf]
      %v252 = vld [vmem:[%s236 + $0x3c] sm:$0xf]
      %v253 = vld [vmem:[%s236 + $0x40] sm:$0xf]
      %v254 = vld [vmem:[%s236 + $0x44] sm:$0xf]
      %v255 = vld [vmem:[%s236 + $0x48] sm:$0xf]
      %v256 = vld [vmem:[%s236 + $0x4c] sm:$0xf]
      %v257 = vld [vmem:[%s236 + $0x50] sm:$0xf]
      %v258 = vld [vmem:[%s236 + $0x54] sm:$0xf]
      %v259 = vld [vmem:[%s236 + $0x58] sm:$0xf]
      %v260 = vld [vmem:[%s236 + $0x5c] sm:$0xf]
      %v261 = vld [vmem:[%s236 + $0x60] sm:$0xf]
      %v262 = vld [vmem:[%s236 + $0x64] sm:$0xf]
      %v263 = vld [vmem:[%s236 + $0x68] sm:$0xf]
      %v264 = vld [vmem:[%s236 + $0x6c] sm:$0xf]
      %v265 = vld [vmem:[%s236 + $0x70] sm:$0xf]
      %v266 = vld [vmem:[%s236 + $0x74] sm:$0xf]
      %v267 = vld [vmem:[%s236 + $0x78] sm:$0xf]
      %v268 = vld [vmem:[%s236 + $0x7c] sm:$0xf]
      %s269 = scalar_lea.vmem %s1, 8
      %v270 = vld [vmem:[%s269] sm:$0xf]
      %v271 = vld [vmem:[%s269 + $0x4] sm:$0x3]
      %v304 = vunpack.c.l.b16 %v237
      %v305 = vunpack.c.l.b16 %v238
      %v306 = vunpack.c.l.b16 %v239
      %v307 = vunpack.c.l.b16 %v240
      %v308 = vunpack.c.l.b16 %v241
      %v309 = vunpack.c.l.b16 %v242
      %v310 = vunpack.c.l.b16 %v243
      %v311 = vunpack.c.l.b16 %v244
      %v312 = vunpack.c.l.b16 %v245
      %v313 = vunpack.c.l.b16 %v246
      %v314 = vunpack.c.l.b16 %v247
      %v315 = vunpack.c.l.b16 %v248
      %v316 = vunpack.c.l.b16 %v249
      %v317 = vunpack.c.l.b16 %v250
      %v318 = vunpack.c.l.b16 %v251
      %v319 = vunpack.c.l.b16 %v252
      %v320 = vunpack.c.l.b16 %v253
      %v321 = vunpack.c.l.b16 %v254
      %v322 = vunpack.c.l.b16 %v255
      %v323 = vunpack.c.l.b16 %v256
      %v324 = vunpack.c.l.b16 %v257
      %v325 = vunpack.c.l.b16 %v258
      %v326 = vunpack.c.l.b16 %v259
      %v327 = vunpack.c.l.b16 %v260
      %v328 = vunpack.c.l.b16 %v261
      %v329 = vunpack.c.l.b16 %v262
      %v330 = vunpack.c.l.b16 %v263
      %v331 = vunpack.c.l.b16 %v264
      %v332 = vunpack.c.l.b16 %v265
      %v333 = vunpack.c.l.b16 %v266
      %v334 = vunpack.c.l.b16 %v267
      %v335 = vunpack.c.l.b16 %v268
      %v336 = vpack.c.b16 %v305, %v304
      %v337 = vpack.c.b16 %v307, %v306
      %v338 = vpack.c.b16 %v309, %v308
      %v339 = vpack.c.b16 %v311, %v310
      %v340 = vpack.c.b16 %v313, %v312
      %v341 = vpack.c.b16 %v315, %v314
      %v342 = vpack.c.b16 %v317, %v316
      %v343 = vpack.c.b16 %v319, %v318
      %v344 = vpack.c.b16 %v321, %v320
      %v345 = vpack.c.b16 %v323, %v322
      %v346 = vpack.c.b16 %v325, %v324
      %v347 = vpack.c.b16 %v327, %v326
      %v348 = vpack.c.b16 %v329, %v328
      %v349 = vpack.c.b16 %v331, %v330
      %v350 = vpack.c.b16 %v333, %v332
      %v351 = vpack.c.b16 %v335, %v334
      %v354 = vunpack.c.l.b16 %v270
      %v355 = vunpack.c.l.b16 %v271
      %v356 = vpack.c.b16 %v355, %v354
      %vm357 = vcmask 97280
      %v359 = vsel %vm357, %v336, 0
      %v362 = vsel %vm357, %v337, 0
      %v365 = vsel %vm357, %v338, 0
      %v368 = vsel %vm357, %v339, 0
      %v371 = vsel %vm357, %v340, 0
      %v374 = vsel %vm357, %v341, 0
      %v377 = vsel %vm357, %v342, 0
      %v380 = vsel %vm357, %v343, 0
      %v383 = vsel %vm357, %v344, 0
      %v386 = vsel %vm357, %v345, 0
      %v389 = vsel %vm357, %v346, 0
      %v392 = vsel %vm357, %v347, 0
      %v395 = vsel %vm357, %v348, 0
      %v398 = vsel %vm357, %v349, 0
      %v401 = vsel %vm357, %v350, 0
      %v404 = vsel %vm357, %v351, 0
      %vm406 = vcmask 1045504
      %v408 = vsel %vm406, %v356, 0
      %410 = vmatprep.subr.bf16.mxu0 0
      %411 = vmatpush1.bf16.msra.mxu0 %v408
      %412 = vmatprep.subr.bf16.mxu0 0
      %413 = vmatpush1.bf16.msra.mxu0 0
      %414 = vmatprep.subr.bf16.mxu0 0
      %415 = vmatpush1.bf16.msra.mxu0 0
      %416 = vmatprep.subr.bf16.mxu0 0
      %417 = vmatpush1.bf16.msra.mxu0 0
      %418 = vmatprep.subr.bf16.mxu0 0
      %419 = vmatpush1.bf16.msra.mxu0 0
      %420 = vmatprep.subr.bf16.mxu0 0
      %421 = vmatpush1.bf16.msra.mxu0 0
      %422 = vmatprep.subr.bf16.mxu0 0
      %423 = vmatpush1.bf16.msra.mxu0 0
      %424 = vmatprep.subr.bf16.mxu0 0
      %425 = vmatpush1.bf16.msra.mxu0 0
      %426 = vmatprep.subr.bf16.mxu0 0
      %427 = vmatpush1.bf16.msra.mxu0 0
      %428 = vmatprep.subr.bf16.mxu0 0
      %429 = vmatpush1.bf16.msra.mxu0 0
      %430 = vmatprep.subr.bf16.mxu0 0
      %431 = vmatpush1.bf16.msra.mxu0 0
      %432 = vmatprep.subr.bf16.mxu0 0
      %433 = vmatpush1.bf16.msra.mxu0 0
      %434 = vmatprep.subr.bf16.mxu0 0
      %435 = vmatpush1.bf16.msra.mxu0 0
      %436 = vmatprep.subr.bf16.mxu0 0
      %437 = vmatpush1.bf16.msra.mxu0 0
      %438 = vmatprep.subr.bf16.mxu0 0
      %439 = vmatpush1.bf16.msra.mxu0 0
      %440 = vmatprep.subr.bf16.mxu0 0
      %441 = vmatpush1.bf16.msra.mxu0 0
      %442 = vmatprep.mubr.bf16.mxu0 0
      %443 = vmatmul.mubr.bf16.gmra.mrb[0].mxu0 %v359
      %v444 = vpop.f32.mrb[0].mxu0
      %v445 = vadd.f32 0.0, %v444
      %v446 = vpop.f32.mrb[0].mxu0
      %v447 = vpop.f32.mrb[0].mxu0
      %v448 = vadd.f32 0.0, %v447
      %v449 = vpop.f32.mrb[0].mxu0
      %450 = vmatprep.mubr.bf16.mxu0 0
      %451 = vmatmul.mubr.bf16.gmra.mrb[0].mxu0 %v362
      %v452 = vpop.f32.mrb[0].mxu0
      %v453 = vadd.f32 0.0, %v452
      %v454 = vpop.f32.mrb[0].mxu0
      %v455 = vpop.f32.mrb[0].mxu0
      %v456 = vadd.f32 0.0, %v455
      %v457 = vpop.f32.mrb[0].mxu0
      %458 = vmatprep.mubr.bf16.mxu0 0
      %459 = vmatmul.mubr.bf16.gmra.mrb[0].mxu0 %v365
      %v460 = vpop.f32.mrb[0].mxu0
      %v461 = vadd.f32 0.0, %v460
      %v462 = vpop.f32.mrb[0].mxu0
      %v463 = vpop.f32.mrb[0].mxu0
      %v464 = vadd.f32 0.0, %v463
      %v465 = vpop.f32.mrb[0].mxu0
      %466 = vmatprep.mubr.bf16.mxu0 0
      %467 = vmatmul.mubr.bf16.gmra.mrb[0].mxu0 %v368
      %v468 = vpop.f32.mrb[0].mxu0
      %v469 = vadd.f32 0.0, %v468
      %v470 = vpop.f32.mrb[0].mxu0
      %v471 = vpop.f32.mrb[0].mxu0
      %v472 = vadd.f32 0.0, %v471
      %v473 = vpop.f32.mrb[0].mxu0
      %474 = vmatprep.mubr.bf16.mxu0 0
      %475 = vmatmul.mubr.bf16.gmra.mrb[0].mxu0 %v371
      %v476 = vpop.f32.mrb[0].mxu0
      %v477 = vadd.f32 0.0, %v476
      %v478 = vpop.f32.mrb[0].mxu0
      %v479 = vpop.f32.mrb[0].mxu0
      %v480 = vadd.f32 0.0, %v479
      %v481 = vpop.f32.mrb[0].mxu0
      %482 = vmatprep.mubr.bf16.mxu0 0
      %483 = vmatmul.mubr.bf16.gmra.mrb[0].mxu0 %v374
      %v484 = vpop.f32.mrb[0].mxu0
      %v485 = vadd.f32 0.0, %v484
      %v486 = vpop.f32.mrb[0].mxu0
      %v487 = vpop.f32.mrb[0].mxu0
      %v488 = vadd.f32 0.0, %v487
      %v489 = vpop.f32.mrb[0].mxu0
      %490 = vmatprep.mubr.bf16.mxu0 0
      %491 = vmatmul.mubr.bf16.gmra.mrb[0].mxu0 %v377
      %v492 = vpop.f32.mrb[0].mxu0
      %v493 = vadd.f32 0.0, %v492
      %v494 = vpop.f32.mrb[0].mxu0
      %v495 = vpop.f32.mrb[0].mxu0
      %v496 = vadd.f32 0.0, %v495
      %v497 = vpop.f32.mrb[0].mxu0
      %498 = vmatprep.mubr.bf16.mxu0 0
      %499 = vmatmul.mubr.bf16.gmra.mrb[0].mxu0 %v380
      %v500 = vpop.f32.mrb[0].mxu0
      %v501 = vadd.f32 0.0, %v500
      %v502 = vpop.f32.mrb[0].mxu0
      %v503 = vpop.f32.mrb[0].mxu0
      %v504 = vadd.f32 0.0, %v503
      %v505 = vpop.f32.mrb[0].mxu0
      %506 = vmatprep.mubr.bf16.mxu0 0
      %507 = vmatmul.mubr.bf16.gmra.mrb[0].mxu0 %v383
      %v508 = vpop.f32.mrb[0].mxu0
      %v509 = vadd.f32 0.0, %v508
      %v510 = vpop.f32.mrb[0].mxu0
      %v511 = vpop.f32.mrb[0].mxu0
      %v512 = vadd.f32 0.0, %v511
      %v513 = vpop.f32.mrb[0].mxu0
      %514 = vmatprep.mubr.bf16.mxu0 0
      %515 = vmatmul.mubr.bf16.gmra.mrb[0].mxu0 %v386
      %v516 = vpop.f32.mrb[0].mxu0
      %v517 = vadd.f32 0.0, %v516
      %v518 = vpop.f32.mrb[0].mxu0
      %v519 = vpop.f32.mrb[0].mxu0
      %v520 = vadd.f32 0.0, %v519
      %v521 = vpop.f32.mrb[0].mxu0
      %522 = vmatprep.mubr.bf16.mxu0 0
      %523 = vmatmul.mubr.bf16.gmra.mrb[0].mxu0 %v389
      %v524 = vpop.f32.mrb[0].mxu0
      %v525 = vadd.f32 0.0, %v524
      %v526 = vpop.f32.mrb[0].mxu0
      %v527 = vpop.f32.mrb[0].mxu0
      %v528 = vadd.f32 0.0, %v527
      %v529 = vpop.f32.mrb[0].mxu0
      %530 = vmatprep.mubr.bf16.mxu0 0
      %531 = vmatmul.mubr.bf16.gmra.mrb[0].mxu0 %v392
      %v532 = vpop.f32.mrb[0].mxu0
      %v533 = vadd.f32 0.0, %v532
      %v534 = vpop.f32.mrb[0].mxu0
      %v535 = vpop.f32.mrb[0].mxu0
      %v536 = vadd.f32 0.0, %v535
      %v537 = vpop.f32.mrb[0].mxu0
      %538 = vmatprep.mubr.bf16.mxu0 0
      %539 = vmatmul.mubr.bf16.gmra.mrb[0].mxu0 %v395
      %v540 = vpop.f32.mrb[0].mxu0
      %v541 = vadd.f32 0.0, %v540
      %v542 = vpop.f32.mrb[0].mxu0
      %v543 = vpop.f32.mrb[0].mxu0
      %v544 = vadd.f32 0.0, %v543
      %v545 = vpop.f32.mrb[0].mxu0
      %546 = vmatprep.mubr.bf16.mxu0 0
      %547 = vmatmul.mubr.bf16.gmra.mrb[0].mxu0 %v398
      %v548 = vpop.f32.mrb[0].mxu0
      %v549 = vadd.f32 0.0, %v548
      %v550 = vpop.f32.mrb[0].mxu0
      %v551 = vpop.f32.mrb[0].mxu0
      %v552 = vadd.f32 0.0, %v551
      %v553 = vpop.f32.mrb[0].mxu0
      %554 = vmatprep.mubr.bf16.mxu0 0
      %555 = vmatmul.mubr.bf16.gmra.mrb[0].mxu0 %v401
      %v556 = vpop.f32.mrb[0].mxu0
      %v557 = vadd.f32 0.0, %v556
      %v558 = vpop.f32.mrb[0].mxu0
      %v559 = vpop.f32.mrb[0].mxu0
      %v560 = vadd.f32 0.0, %v559
      %v561 = vpop.f32.mrb[0].mxu0
      %562 = vmatprep.mubr.bf16.mxu0 0
      %563 = vmatmul.mubr.bf16.gmra.mrb[0].mxu0 %v404
      %v564 = vpop.f32.mrb[0].mxu0
      %v565 = vadd.f32 0.0, %v564
      %v566 = vpop.f32.mrb[0].mxu0
      %v567 = vpop.f32.mrb[0].mxu0
      %v568 = vadd.f32 0.0, %v567
      %v569 = vpop.f32.mrb[0].mxu0
      %570 = vdwg.mxu0
      %v603 = vunpack.c.l.b16 %v199
      %v604 = vunpack.c.l.b16 %v200
      %v605 = vunpack.c.l.b16 %v201
      %v606 = vunpack.c.l.b16 %v202
      %v607 = vunpack.c.l.b16 %v203
      %v608 = vunpack.c.l.b16 %v204
      %v609 = vunpack.c.l.b16 %v205
      %v610 = vunpack.c.l.b16 %v206
      %v611 = vunpack.c.l.b16 %v207
      %v612 = vunpack.c.l.b16 %v208
      %v613 = vunpack.c.l.b16 %v209
      %v614 = vunpack.c.l.b16 %v210
      %v615 = vunpack.c.l.b16 %v211
      %v616 = vunpack.c.l.b16 %v212
      %v617 = vunpack.c.l.b16 %v213
      %v618 = vunpack.c.l.b16 %v214
      %v619 = vunpack.c.l.b16 %v215
      %v620 = vunpack.c.l.b16 %v216
      %v621 = vunpack.c.l.b16 %v217
      %v622 = vunpack.c.l.b16 %v218
      %v623 = vunpack.c.l.b16 %v219
      %v624 = vunpack.c.l.b16 %v220
      %v625 = vunpack.c.l.b16 %v221
      %v626 = vunpack.c.l.b16 %v222
      %v627 = vunpack.c.l.b16 %v223
      %v628 = vunpack.c.l.b16 %v224
      %v629 = vunpack.c.l.b16 %v225
      %v630 = vunpack.c.l.b16 %v226
      %v631 = vunpack.c.l.b16 %v227
      %v632 = vunpack.c.l.b16 %v228
      %v633 = vunpack.c.l.b16 %v229
      %v634 = vunpack.c.l.b16 %v230
      %v635 = vpack.c.b16 %v604, %v603
      %v636 = vpack.c.b16 %v606, %v605
      %v637 = vpack.c.b16 %v608, %v607
      %v638 = vpack.c.b16 %v610, %v609
      %v639 = vpack.c.b16 %v612, %v611
      %v640 = vpack.c.b16 %v614, %v613
      %v641 = vpack.c.b16 %v616, %v615
      %v642 = vpack.c.b16 %v618, %v617
      %v643 = vpack.c.b16 %v620, %v619
      %v644 = vpack.c.b16 %v622, %v621
      %v645 = vpack.c.b16 %v624, %v623
      %v646 = vpack.c.b16 %v626, %v625
      %v647 = vpack.c.b16 %v628, %v627
      %v648 = vpack.c.b16 %v630, %v629
      %v649 = vpack.c.b16 %v632, %v631
      %v650 = vpack.c.b16 %v634, %v633
      %v653 = vunpack.c.l.b16 %v231
      %v654 = vunpack.c.l.b16 %v232
      %v655 = vpack.c.b16 %v654, %v653
      %v657 = vsel %vm357, %v635, 0
      %v660 = vsel %vm357, %v636, 0
      %v663 = vsel %vm357, %v637, 0
      %v666 = vsel %vm357, %v638, 0
      %v669 = vsel %vm357, %v639, 0
      %v672 = vsel %vm357, %v640, 0
      %v675 = vsel %vm357, %v641, 0
      %v678 = vsel %vm357, %v642, 0
      %v681 = vsel %vm357, %v643, 0
      %v684 = vsel %vm357, %v644, 0
      %v687 = vsel %vm357, %v645, 0
      %v690 = vsel %vm357, %v646, 0
      %v693 = vsel %vm357, %v647, 0
      %v696 = vsel %vm357, %v648, 0
      %v699 = vsel %vm357, %v649, 0
      %v702 = vsel %vm357, %v650, 0
      %v705 = vsel %vm406, %v655, 0
      %707 = vmatprep.subr.bf16.mxu0 0
      %708 = vmatpush1.bf16.msra.mxu0 %v705
      %709 = vmatprep.subr.bf16.mxu0 0
      %710 = vmatpush1.bf16.msra.mxu0 0
      %711 = vmatprep.subr.bf16.mxu0 0
      %712 = vmatpush1.bf16.msra.mxu0 0
      %713 = vmatprep.subr.bf16.mxu0 0
      %714 = vmatpush1.bf16.msra.mxu0 0
      %715 = vmatprep.subr.bf16.mxu0 0
      %716 = vmatpush1.bf16.msra.mxu0 0
      %717 = vmatprep.subr.bf16.mxu0 0
      %718 = vmatpush1.bf16.msra.mxu0 0
      %719 = vmatprep.subr.bf16.mxu0 0
      %720 = vmatpush1.bf16.msra.mxu0 0
      %721 = vmatprep.subr.bf16.mxu0 0
      %722 = vmatpush1.bf16.msra.mxu0 0
      %723 = vmatprep.subr.bf16.mxu0 0
      %724 = vmatpush1.bf16.msra.mxu0 0
      %725 = vmatprep.subr.bf16.mxu0 0
      %726 = vmatpush1.bf16.msra.mxu0 0
      %727 = vmatprep.subr.bf16.mxu0 0
      %728 = vmatpush1.bf16.msra.mxu0 0
      %729 = vmatprep.subr.bf16.mxu0 0
      %730 = vmatpush1.bf16.msra.mxu0 0
      %731 = vmatprep.subr.bf16.mxu0 0
      %732 = vmatpush1.bf16.msra.mxu0 0
      %733 = vmatprep.subr.bf16.mxu0 0
      %734 = vmatpush1.bf16.msra.mxu0 0
      %735 = vmatprep.subr.bf16.mxu0 0
      %736 = vmatpush1.bf16.msra.mxu0 0
      %737 = vmatprep.subr.bf16.mxu0 0
      %738 = vmatpush1.bf16.msra.mxu0 0
      %739 = vmatprep.mubr.bf16.mxu0 0
      %740 = vmatmul.mubr.bf16.gmra.mrb[0].mxu0 %v657
      %v741 = vpop.f32.mrb[0].mxu0
      %v742 = vadd.f32 %v445, %v741
      %v743 = vpop.f32.mrb[0].mxu0
      %v744 = vpop.f32.mrb[0].mxu0
      %v745 = vadd.f32 %v448, %v744
      %v746 = vpop.f32.mrb[0].mxu0
      %747 = vmatprep.mubr.bf16.mxu0 0
      %748 = vmatmul.mubr.bf16.gmra.mrb[0].mxu0 %v660
      %v749 = vpop.f32.mrb[0].mxu0
      %v750 = vadd.f32 %v453, %v749
      %v751 = vpop.f32.mrb[0].mxu0
      %v752 = vpop.f32.mrb[0].mxu0
      %v753 = vadd.f32 %v456, %v752
      %v754 = vpop.f32.mrb[0].mxu0
      %755 = vmatprep.mubr.bf16.mxu0 0
      %756 = vmatmul.mubr.bf16.gmra.mrb[0].mxu0 %v663
      %v757 = vpop.f32.mrb[0].mxu0
      %v758 = vadd.f32 %v461, %v757
      %v759 = vpop.f32.mrb[0].mxu0
      %v760 = vpop.f32.mrb[0].mxu0
      %v761 = vadd.f32 %v464, %v760
      %v762 = vpop.f32.mrb[0].mxu0
      %763 = vmatprep.mubr.bf16.mxu0 0
      %764 = vmatmul.mubr.bf16.gmra.mrb[0].mxu0 %v666
      %v765 = vpop.f32.mrb[0].mxu0
      %v766 = vadd.f32 %v469, %v765
      %v767 = vpop.f32.mrb[0].mxu0
      %v768 = vpop.f32.mrb[0].mxu0
      %v769 = vadd.f32 %v472, %v768
      %v770 = vpop.f32.mrb[0].mxu0
      %771 = vmatprep.mubr.bf16.mxu0 0
      %772 = vmatmul.mubr.bf16.gmra.mrb[0].mxu0 %v669
      %v773 = vpop.f32.mrb[0].mxu0
      %v774 = vadd.f32 %v477, %v773
      %v775 = vpop.f32.mrb[0].mxu0
      %v776 = vpop.f32.mrb[0].mxu0
      %v777 = vadd.f32 %v480, %v776
      %v778 = vpop.f32.mrb[0].mxu0
      %779 = vmatprep.mubr.bf16.mxu0 0
      %780 = vmatmul.mubr.bf16.gmra.mrb[0].mxu0 %v672
      %v781 = vpop.f32.mrb[0].mxu0
      %v782 = vadd.f32 %v485, %v781
      %v783 = vpop.f32.mrb[0].mxu0
      %v784 = vpop.f32.mrb[0].mxu0
      %v785 = vadd.f32 %v488, %v784
      %v786 = vpop.f32.mrb[0].mxu0
      %787 = vmatprep.mubr.bf16.mxu0 0
      %788 = vmatmul.mubr.bf16.gmra.mrb[0].mxu0 %v675
      %v789 = vpop.f32.mrb[0].mxu0
      %v790 = vadd.f32 %v493, %v789
      %v791 = vpop.f32.mrb[0].mxu0
      %v792 = vpop.f32.mrb[0].mxu0
      %v793 = vadd.f32 %v496, %v792
      %v794 = vpop.f32.mrb[0].mxu0
      %795 = vmatprep.mubr.bf16.mxu0 0
      %796 = vmatmul.mubr.bf16.gmra.mrb[0].mxu0 %v678
      %v797 = vpop.f32.mrb[0].mxu0
      %v798 = vadd.f32 %v501, %v797
      %v799 = vpop.f32.mrb[0].mxu0
      %v800 = vpop.f32.mrb[0].mxu0
      %v801 = vadd.f32 %v504, %v800
      %v802 = vpop.f32.mrb[0].mxu0
      %803 = vmatprep.mubr.bf16.mxu0 0
      %804 = vmatmul.mubr.bf16.gmra.mrb[0].mxu0 %v681
      %v805 = vpop.f32.mrb[0].mxu0
      %v806 = vadd.f32 %v509, %v805
      %v807 = vpop.f32.mrb[0].mxu0
      %v808 = vpop.f32.mrb[0].mxu0
      %v809 = vadd.f32 %v512, %v808
      %v810 = vpop.f32.mrb[0].mxu0
      %811 = vmatprep.mubr.bf16.mxu0 0
      %812 = vmatmul.mubr.bf16.gmra.mrb[0].mxu0 %v684
      %v813 = vpop.f32.mrb[0].mxu0
      %v814 = vadd.f32 %v517, %v813
      %v815 = vpop.f32.mrb[0].mxu0
      %v816 = vpop.f32.mrb[0].mxu0
      %v817 = vadd.f32 %v520, %v816
      %v818 = vpop.f32.mrb[0].mxu0
      %819 = vmatprep.mubr.bf16.mxu0 0
      %820 = vmatmul.mubr.bf16.gmra.mrb[0].mxu0 %v687
      %v821 = vpop.f32.mrb[0].mxu0
      %v822 = vadd.f32 %v525, %v821
      %v823 = vpop.f32.mrb[0].mxu0
      %v824 = vpop.f32.mrb[0].mxu0
      %v825 = vadd.f32 %v528, %v824
      %v826 = vpop.f32.mrb[0].mxu0
      %827 = vmatprep.mubr.bf16.mxu0 0
      %828 = vmatmul.mubr.bf16.gmra.mrb[0].mxu0 %v690
      %v829 = vpop.f32.mrb[0].mxu0
      %v830 = vadd.f32 %v533, %v829
      %v831 = vpop.f32.mrb[0].mxu0
      %v832 = vpop.f32.mrb[0].mxu0
      %v833 = vadd.f32 %v536, %v832
      %v834 = vpop.f32.mrb[0].mxu0
      %835 = vmatprep.mubr.bf16.mxu0 0
      %836 = vmatmul.mubr.bf16.gmra.mrb[0].mxu0 %v693
      %v837 = vpop.f32.mrb[0].mxu0
      %v838 = vadd.f32 %v541, %v837
      %v839 = vpop.f32.mrb[0].mxu0
      %v840 = vpop.f32.mrb[0].mxu0
      %v841 = vadd.f32 %v544, %v840
      %v842 = vpop.f32.mrb[0].mxu0
      %843 = vmatprep.mubr.bf16.mxu0 0
      %844 = vmatmul.mubr.bf16.gmra.mrb[0].mxu0 %v696
      %v845 = vpop.f32.mrb[0].mxu0
      %v846 = vadd.f32 %v549, %v845
      %v847 = vpop.f32.mrb[0].mxu0
      %v848 = vpop.f32.mrb[0].mxu0
      %v849 = vadd.f32 %v552, %v848
      %v850 = vpop.f32.mrb[0].mxu0
      %851 = vmatprep.mubr.bf16.mxu0 0
      %852 = vmatmul.mubr.bf16.gmra.mrb[0].mxu0 %v699
      %v853 = vpop.f32.mrb[0].mxu0
      %v854 = vadd.f32 %v557, %v853
      %v855 = vpop.f32.mrb[0].mxu0
      %v856 = vpop.f32.mrb[0].mxu0
      %v857 = vadd.f32 %v560, %v856
      %v858 = vpop.f32.mrb[0].mxu0
      %859 = vmatprep.mubr.bf16.mxu0 0
      %860 = vmatmul.mubr.bf16.gmra.mrb[0].mxu0 %v702
      %v861 = vpop.f32.mrb[0].mxu0
      %v862 = vadd.f32 %v565, %v861
      %v863 = vpop.f32.mrb[0].mxu0
      %v864 = vpop.f32.mrb[0].mxu0
      %v865 = vadd.f32 %v568, %v864
      %v866 = vpop.f32.mrb[0].mxu0
      %867 = vdwg.mxu0
      %s868 = sadd.s32 %s195, 2
      %s869 = smul.u32 %s868, 2
      %s870 = smul.addr %s869, 4
      %s871 = scalar_lea.vmem %s183, %s870
      %v872 = vld [vmem:[%s871] sm:$0xf]
      %v873 = vld [vmem:[%s871 + $0x4] sm:$0xf]
      %v874 = vld [vmem:[%s871 + $0x8] sm:$0xf]
      %v875 = vld [vmem:[%s871 + $0xc] sm:$0xf]
      %v876 = vld [vmem:[%s871 + $0x10] sm:$0xf]
      %v877 = vld [vmem:[%s871 + $0x14] sm:$0xf]
      %v878 = vld [vmem:[%s871 + $0x18] sm:$0xf]
      %v879 = vld [vmem:[%s871 + $0x1c] sm:$0xf]
      %v880 = vld [vmem:[%s871 + $0x20] sm:$0xf]
      %v881 = vld [vmem:[%s871 + $0x24] sm:$0xf]
      %v882 = vld [vmem:[%s871 + $0x28] sm:$0xf]
      %v883 = vld [vmem:[%s871 + $0x2c] sm:$0xf]
      %v884 = vld [vmem:[%s871 + $0x30] sm:$0xf]
      %v885 = vld [vmem:[%s871 + $0x34] sm:$0xf]
      %v886 = vld [vmem:[%s871 + $0x38] sm:$0xf]
      %v887 = vld [vmem:[%s871 + $0x3c] sm:$0xf]
      %v888 = vld [vmem:[%s871 + $0x40] sm:$0xf]
      %v889 = vld [vmem:[%s871 + $0x44] sm:$0xf]
      %v890 = vld [vmem:[%s871 + $0x48] sm:$0xf]
      %v891 = vld [vmem:[%s871 + $0x4c] sm:$0xf]
      %v892 = vld [vmem:[%s871 + $0x50] sm:$0xf]
      %v893 = vld [vmem:[%s871 + $0x54] sm:$0xf]
      %v894 = vld [vmem:[%s871 + $0x58] sm:$0xf]
      %v895 = vld [vmem:[%s871 + $0x5c] sm:$0xf]
      %v896 = vld [vmem:[%s871 + $0x60] sm:$0xf]
      %v897 = vld [vmem:[%s871 + $0x64] sm:$0xf]
      %v898 = vld [vmem:[%s871 + $0x68] sm:$0xf]
      %v899 = vld [vmem:[%s871 + $0x6c] sm:$0xf]
      %v900 = vld [vmem:[%s871 + $0x70] sm:$0xf]
      %v901 = vld [vmem:[%s871 + $0x74] sm:$0xf]
      %v902 = vld [vmem:[%s871 + $0x78] sm:$0xf]
      %v903 = vld [vmem:[%s871 + $0x7c] sm:$0xf]
      %s904 = scalar_lea.vmem %s1, 16
      %v905 = vld [vmem:[%s904] sm:$0xf]
      %v906 = vld [vmem:[%s904 + $0x4] sm:$0x3]
      %v939 = vunpack.c.l.b16 %v872
      %v940 = vunpack.c.l.b16 %v873
      %v941 = vunpack.c.l.b16 %v874
      %v942 = vunpack.c.l.b16 %v875
      %v943 = vunpack.c.l.b16 %v876
      %v944 = vunpack.c.l.b16 %v877
      %v945 = vunpack.c.l.b16 %v878
      %v946 = vunpack.c.l.b16 %v879
      %v947 = vunpack.c.l.b16 %v880
      %v948 = vunpack.c.l.b16 %v881
      %v949 = vunpack.c.l.b16 %v882
      %v950 = vunpack.c.l.b16 %v883
      %v951 = vunpack.c.l.b16 %v884
      %v952 = vunpack.c.l.b16 %v885
      %v953 = vunpack.c.l.b16 %v886
      %v954 = vunpack.c.l.b16 %v887
      %v955 = vunpack.c.l.b16 %v888
      %v956 = vunpack.c.l.b16 %v889
      %v957 = vunpack.c.l.b16 %v890
      %v958 = vunpack.c.l.b16 %v891
      %v959 = vunpack.c.l.b16 %v892
      %v960 = vunpack.c.l.b16 %v893
      %v961 = vunpack.c.l.b16 %v894
      %v962 = vunpack.c.l.b16 %v895
      %v963 = vunpack.c.l.b16 %v896
      %v964 = vunpack.c.l.b16 %v897
      %v965 = vunpack.c.l.b16 %v898
      %v966 = vunpack.c.l.b16 %v899
      %v967 = vunpack.c.l.b16 %v900
      %v968 = vunpack.c.l.b16 %v901
      %v969 = vunpack.c.l.b16 %v902
      %v970 = vunpack.c.l.b16 %v903
      %v971 = vpack.c.b16 %v940, %v939
      %v972 = vpack.c.b16 %v942, %v941
      %v973 = vpack.c.b16 %v944, %v943
      %v974 = vpack.c.b16 %v946, %v945
      %v975 = vpack.c.b16 %v948, %v947
      %v976 = vpack.c.b16 %v950, %v949
      %v977 = vpack.c.b16 %v952, %v951
      %v978 = vpack.c.b16 %v954, %v953
      %v979 = vpack.c.b16 %v956, %v955
      %v980 = vpack.c.b16 %v958, %v957
      %v981 = vpack.c.b16 %v960, %v959
      %v982 = vpack.c.b16 %v962, %v961
      %v983 = vpack.c.b16 %v964, %v963
      %v984 = vpack.c.b16 %v966, %v965
      %v985 = vpack.c.b16 %v968, %v967
      %v986 = vpack.c.b16 %v970, %v969
      %v989 = vunpack.c.l.b16 %v905
      %v990 = vunpack.c.l.b16 %v906
      %v991 = vpack.c.b16 %v990, %v989
      %v993 = vsel %vm357, %v971, 0
      %v996 = vsel %vm357, %v972, 0
      %v999 = vsel %vm357, %v973, 0
      %v1002 = vsel %vm357, %v974, 0
      %v1005 = vsel %vm357, %v975, 0
      %v1008 = vsel %vm357, %v976, 0
      %v1011 = vsel %vm357, %v977, 0
      %v1014 = vsel %vm357, %v978, 0
      %v1017 = vsel %vm357, %v979, 0
      %v1020 = vsel %vm357, %v980, 0
      %v1023 = vsel %vm357, %v981, 0
      %v1026 = vsel %vm357, %v982, 0
      %v1029 = vsel %vm357, %v983, 0
      %v1032 = vsel %vm357, %v984, 0
      %v1035 = vsel %vm357, %v985, 0
      %v1038 = vsel %vm357, %v986, 0
      %v1041 = vsel %vm406, %v991, 0
      %1043 = vmatprep.subr.bf16.mxu0 0
      %1044 = vmatpush1.bf16.msra.mxu0 %v1041
      %1045 = vmatprep.subr.bf16.mxu0 0
      %1046 = vmatpush1.bf16.msra.mxu0 0
      %1047 = vmatprep.subr.bf16.mxu0 0
      %1048 = vmatpush1.bf16.msra.mxu0 0
      %1049 = vmatprep.subr.bf16.mxu0 0
      %1050 = vmatpush1.bf16.msra.mxu0 0
      %1051 = vmatprep.subr.bf16.mxu0 0
      %1052 = vmatpush1.bf16.msra.mxu0 0
      %1053 = vmatprep.subr.bf16.mxu0 0
      %1054 = vmatpush1.bf16.msra.mxu0 0
      %1055 = vmatprep.subr.bf16.mxu0 0
      %1056 = vmatpush1.bf16.msra.mxu0 0
      %1057 = vmatprep.subr.bf16.mxu0 0
      %1058 = vmatpush1.bf16.msra.mxu0 0
      %1059 = vmatprep.subr.bf16.mxu0 0
      %1060 = vmatpush1.bf16.msra.mxu0 0
      %1061 = vmatprep.subr.bf16.mxu0 0
      %1062 = vmatpush1.bf16.msra.mxu0 0
      %1063 = vmatprep.subr.bf16.mxu0 0
      %1064 = vmatpush1.bf16.msra.mxu0 0
      %1065 = vmatprep.subr.bf16.mxu0 0
      %1066 = vmatpush1.bf16.msra.mxu0 0
      %1067 = vmatprep.subr.bf16.mxu0 0
      %1068 = vmatpush1.bf16.msra.mxu0 0
      %1069 = vmatprep.subr.bf16.mxu0 0
      %1070 = vmatpush1.bf16.msra.mxu0 0
      %1071 = vmatprep.subr.bf16.mxu0 0
      %1072 = vmatpush1.bf16.msra.mxu0 0
      %1073 = vmatprep.subr.bf16.mxu0 0
      %1074 = vmatpush1.bf16.msra.mxu0 0
      %1075 = vmatprep.mubr.bf16.mxu0 0
      %1076 = vmatmul.mubr.bf16.gmra.mrb[0].mxu0 %v993
      %v1077 = vpop.f32.mrb[0].mxu0
      %v1078 = vadd.f32 0.0, %v1077
      %v1079 = vpop.f32.mrb[0].mxu0
      %v1080 = vpop.f32.mrb[0].mxu0
      %v1081 = vadd.f32 0.0, %v1080
      %v1082 = vpop.f32.mrb[0].mxu0
      %1083 = vmatprep.mubr.bf16.mxu0 0
      %1084 = vmatmul.mubr.bf16.gmra.mrb[0].mxu0 %v996
      %v1085 = vpop.f32.mrb[0].mxu0
      %v1086 = vadd.f32 0.0, %v1085
      %v1087 = vpop.f32.mrb[0].mxu0
      %v1088 = vpop.f32.mrb[0].mxu0
      %v1089 = vadd.f32 0.0, %v1088
      %v1090 = vpop.f32.mrb[0].mxu0
      %1091 = vmatprep.mubr.bf16.mxu0 0
      %1092 = vmatmul.mubr.bf16.gmra.mrb[0].mxu0 %v999
      %v1093 = vpop.f32.mrb[0].mxu0
      %v1094 = vadd.f32 0.0, %v1093
      %v1095 = vpop.f32.mrb[0].mxu0
      %v1096 = vpop.f32.mrb[0].mxu0
      %v1097 = vadd.f32 0.0, %v1096
      %v1098 = vpop.f32.mrb[0].mxu0
      %1099 = vmatprep.mubr.bf16.mxu0 0
      %1100 = vmatmul.mubr.bf16.gmra.mrb[0].mxu0 %v1002
      %v1101 = vpop.f32.mrb[0].mxu0
      %v1102 = vadd.f32 0.0, %v1101
      %v1103 = vpop.f32.mrb[0].mxu0
      %v1104 = vpop.f32.mrb[0].mxu0
      %v1105 = vadd.f32 0.0, %v1104
      %v1106 = vpop.f32.mrb[0].mxu0
      %1107 = vmatprep.mubr.bf16.mxu0 0
      %1108 = vmatmul.mubr.bf16.gmra.mrb[0].mxu0 %v1005
      %v1109 = vpop.f32.mrb[0].mxu0
      %v1110 = vadd.f32 0.0, %v1109
      %v1111 = vpop.f32.mrb[0].mxu0
      %v1112 = vpop.f32.mrb[0].mxu0
      %v1113 = vadd.f32 0.0, %v1112
      %v1114 = vpop.f32.mrb[0].mxu0
      %1115 = vmatprep.mubr.bf16.mxu0 0
      %1116 = vmatmul.mubr.bf16.gmra.mrb[0].mxu0 %v1008
      %v1117 = vpop.f32.mrb[0].mxu0
      %v1118 = vadd.f32 0.0, %v1117
      %v1119 = vpop.f32.mrb[0].mxu0
      %v1120 = vpop.f32.mrb[0].mxu0
      %v1121 = vadd.f32 0.0, %v1120
      %v1122 = vpop.f32.mrb[0].mxu0
      %1123 = vmatprep.mubr.bf16.mxu0 0
      %1124 = vmatmul.mubr.bf16.gmra.mrb[0].mxu0 %v1011
      %v1125 = vpop.f32.mrb[0].mxu0
      %v1126 = vadd.f32 0.0, %v1125
      %v1127 = vpop.f32.mrb[0].mxu0
      %v1128 = vpop.f32.mrb[0].mxu0
      %v1129 = vadd.f32 0.0, %v1128
      %v1130 = vpop.f32.mrb[0].mxu0
      %1131 = vmatprep.mubr.bf16.mxu0 0
      %1132 = vmatmul.mubr.bf16.gmra.mrb[0].mxu0 %v1014
      %v1133 = vpop.f32.mrb[0].mxu0
      %v1134 = vadd.f32 0.0, %v1133
      %v1135 = vpop.f32.mrb[0].mxu0
      %v1136 = vpop.f32.mrb[0].mxu0
      %v1137 = vadd.f32 0.0, %v1136
      %v1138 = vpop.f32.mrb[0].mxu0
      %1139 = vmatprep.mubr.bf16.mxu0 0
      %1140 = vmatmul.mubr.bf16.gmra.mrb[0].mxu0 %v1017
      %v1141 = vpop.f32.mrb[0].mxu0
      %v1142 = vadd.f32 0.0, %v1141
      %v1143 = vpop.f32.mrb[0].mxu0
      %v1144 = vpop.f32.mrb[0].mxu0
      %v1145 = vadd.f32 0.0, %v1144
      %v1146 = vpop.f32.mrb[0].mxu0
      %1147 = vmatprep.mubr.bf16.mxu0 0
      %1148 = vmatmul.mubr.bf16.gmra.mrb[0].mxu0 %v1020
      %v1149 = vpop.f32.mrb[0].mxu0
      %v1150 = vadd.f32 0.0, %v1149
      %v1151 = vpop.f32.mrb[0].mxu0
      %v1152 = vpop.f32.mrb[0].mxu0
      %v1153 = vadd.f32 0.0, %v1152
      %v1154 = vpop.f32.mrb[0].mxu0
      %1155 = vmatprep.mubr.bf16.mxu0 0
      %1156 = vmatmul.mubr.bf16.gmra.mrb[0].mxu0 %v1023
      %v1157 = vpop.f32.mrb[0].mxu0
      %v1158 = vadd.f32 0.0, %v1157
      %v1159 = vpop.f32.mrb[0].mxu0
      %v1160 = vpop.f32.mrb[0].mxu0
      %v1161 = vadd.f32 0.0, %v1160
      %v1162 = vpop.f32.mrb[0].mxu0
      %1163 = vmatprep.mubr.bf16.mxu0 0
      %1164 = vmatmul.mubr.bf16.gmra.mrb[0].mxu0 %v1026
      %v1165 = vpop.f32.mrb[0].mxu0
      %v1166 = vadd.f32 0.0, %v1165
      %v1167 = vpop.f32.mrb[0].mxu0
      %v1168 = vpop.f32.mrb[0].mxu0
      %v1169 = vadd.f32 0.0, %v1168
      %v1170 = vpop.f32.mrb[0].mxu0
      %1171 = vmatprep.mubr.bf16.mxu0 0
      %1172 = vmatmul.mubr.bf16.gmra.mrb[0].mxu0 %v1029
      %v1173 = vpop.f32.mrb[0].mxu0
      %v1174 = vadd.f32 0.0, %v1173
      %v1175 = vpop.f32.mrb[0].mxu0
      %v1176 = vpop.f32.mrb[0].mxu0
      %v1177 = vadd.f32 0.0, %v1176
      %v1178 = vpop.f32.mrb[0].mxu0
      %1179 = vmatprep.mubr.bf16.mxu0 0
      %1180 = vmatmul.mubr.bf16.gmra.mrb[0].mxu0 %v1032
      %v1181 = vpop.f32.mrb[0].mxu0
      %v1182 = vadd.f32 0.0, %v1181
      %v1183 = vpop.f32.mrb[0].mxu0
      %v1184 = vpop.f32.mrb[0].mxu0
      %v1185 = vadd.f32 0.0, %v1184
      %v1186 = vpop.f32.mrb[0].mxu0
      %1187 = vmatprep.mubr.bf16.mxu0 0
      %1188 = vmatmul.mubr.bf16.gmra.mrb[0].mxu0 %v1035
      %v1189 = vpop.f32.mrb[0].mxu0
      %v1190 = vadd.f32 0.0, %v1189
      %v1191 = vpop.f32.mrb[0].mxu0
      %v1192 = vpop.f32.mrb[0].mxu0
      %v1193 = vadd.f32 0.0, %v1192
      %v1194 = vpop.f32.mrb[0].mxu0
      %1195 = vmatprep.mubr.bf16.mxu0 0
      %1196 = vmatmul.mubr.bf16.gmra.mrb[0].mxu0 %v1038
      %v1197 = vpop.f32.mrb[0].mxu0
      %v1198 = vadd.f32 0.0, %v1197
      %v1199 = vpop.f32.mrb[0].mxu0
      %v1200 = vpop.f32.mrb[0].mxu0
      %v1201 = vadd.f32 0.0, %v1200
      %v1202 = vpop.f32.mrb[0].mxu0
      %1203 = vdwg.mxu0
      %v1204 = vadd.f32 %v742, %v1078
      %v1205 = vadd.f32 %v745, %v1081
      %v1206 = vadd.f32 %v750, %v1086
      %v1207 = vadd.f32 %v753, %v1089
      %v1208 = vadd.f32 %v758, %v1094
      %v1209 = vadd.f32 %v761, %v1097
      %v1210 = vadd.f32 %v766, %v1102
      %v1211 = vadd.f32 %v769, %v1105
      %v1212 = vadd.f32 %v774, %v1110
      %v1213 = vadd.f32 %v777, %v1113
      %v1214 = vadd.f32 %v782, %v1118
      %v1215 = vadd.f32 %v785, %v1121
      %v1216 = vadd.f32 %v790, %v1126
      %v1217 = vadd.f32 %v793, %v1129
      %v1218 = vadd.f32 %v798, %v1134
      %v1219 = vadd.f32 %v801, %v1137
      %v1220 = vadd.f32 %v806, %v1142
      %v1221 = vadd.f32 %v809, %v1145
      %v1222 = vadd.f32 %v814, %v1150
      %v1223 = vadd.f32 %v817, %v1153
      %v1224 = vadd.f32 %v822, %v1158
      %v1225 = vadd.f32 %v825, %v1161
      %v1226 = vadd.f32 %v830, %v1166
      %v1227 = vadd.f32 %v833, %v1169
      %v1228 = vadd.f32 %v838, %v1174
      %v1229 = vadd.f32 %v841, %v1177
      %v1230 = vadd.f32 %v846, %v1182
      %v1231 = vadd.f32 %v849, %v1185
      %v1232 = vadd.f32 %v854, %v1190
      %v1233 = vadd.f32 %v857, %v1193
      %v1234 = vadd.f32 %v862, %v1198
      %v1235 = vadd.f32 %v865, %v1201
      %v1236 = vld [vmem:[%s2] sm:$0x1]
      %v1238 = vlaneseq
      %v1239 = vshrl.u32 %v1238, 7
      %v1240 = vsub.s32 0, %v1239
      %v1241 = vrot.slane %v1236, %v1240
      %v1243 = vadd.f32 %v1204, %v1241
      %v1244 = vadd.f32 %v1205, %v1241
      %v1245 = vadd.f32 %v1206, %v1241
      %v1246 = vadd.f32 %v1207, %v1241
      %v1247 = vadd.f32 %v1208, %v1241
      %v1248 = vadd.f32 %v1209, %v1241
      %v1249 = vadd.f32 %v1210, %v1241
      %v1250 = vadd.f32 %v1211, %v1241
      %v1251 = vadd.f32 %v1212, %v1241
      %v1252 = vadd.f32 %v1213, %v1241
      %v1253 = vadd.f32 %v1214, %v1241
      %v1254 = vadd.f32 %v1215, %v1241
      %v1255 = vadd.f32 %v1216, %v1241
      %v1256 = vadd.f32 %v1217, %v1241
      %v1257 = vadd.f32 %v1218, %v1241
      %v1258 = vadd.f32 %v1219, %v1241
      %v1259 = vadd.f32 %v1220, %v1241
      %v1260 = vadd.f32 %v1221, %v1241
      %v1261 = vadd.f32 %v1222, %v1241
      %v1262 = vadd.f32 %v1223, %v1241
      %v1263 = vadd.f32 %v1224, %v1241
      %v1264 = vadd.f32 %v1225, %v1241
      %v1265 = vadd.f32 %v1226, %v1241
      %v1266 = vadd.f32 %v1227, %v1241
      %v1267 = vadd.f32 %v1228, %v1241
      %v1268 = vadd.f32 %v1229, %v1241
      %v1269 = vadd.f32 %v1230, %v1241
      %v1270 = vadd.f32 %v1231, %v1241
      %v1271 = vadd.f32 %v1232, %v1241
      %v1272 = vadd.f32 %v1233, %v1241
      %v1273 = vadd.f32 %v1234, %v1241
      %v1274 = vadd.f32 %v1235, %v1241
      %v1275 = vmax.f32 %v1243, 0.0
      %v1276 = vmax.f32 %v1244, 0.0
      %v1277 = vmax.f32 %v1245, 0.0
      %v1278 = vmax.f32 %v1246, 0.0
      %v1279 = vmax.f32 %v1247, 0.0
      %v1280 = vmax.f32 %v1248, 0.0
      %v1281 = vmax.f32 %v1249, 0.0
      %v1282 = vmax.f32 %v1250, 0.0
      %v1283 = vmax.f32 %v1251, 0.0
      %v1284 = vmax.f32 %v1252, 0.0
      %v1285 = vmax.f32 %v1253, 0.0
      %v1286 = vmax.f32 %v1254, 0.0
      %v1287 = vmax.f32 %v1255, 0.0
      %v1288 = vmax.f32 %v1256, 0.0
      %v1289 = vmax.f32 %v1257, 0.0
      %v1290 = vmax.f32 %v1258, 0.0
      %v1291 = vmax.f32 %v1259, 0.0
      %v1292 = vmax.f32 %v1260, 0.0
      %v1293 = vmax.f32 %v1261, 0.0
      %v1294 = vmax.f32 %v1262, 0.0
      %v1295 = vmax.f32 %v1263, 0.0
      %v1296 = vmax.f32 %v1264, 0.0
      %v1297 = vmax.f32 %v1265, 0.0
      %v1298 = vmax.f32 %v1266, 0.0
      %v1299 = vmax.f32 %v1267, 0.0
      %v1300 = vmax.f32 %v1268, 0.0
      %v1301 = vmax.f32 %v1269, 0.0
      %v1302 = vmax.f32 %v1270, 0.0
      %v1303 = vmax.f32 %v1271, 0.0
      %v1304 = vmax.f32 %v1272, 0.0
      %v1305 = vmax.f32 %v1273, 0.0
      %v1306 = vmax.f32 %v1274, 0.0
      %vm1307 = vcmask 64512
      %1308 = vst.msk [vmem:[%s192] sm:$0xff] %vm1307, %v1275
      %1309 = vst.msk [vmem:[%s192 + $0x8] sm:$0xff] %vm1307, %v1276
      %1310 = vst.msk [vmem:[%s192 + $0x10] sm:$0xff] %vm1307, %v1277
      %1311 = vst.msk [vmem:[%s192 + $0x18] sm:$0xff] %vm1307, %v1278
      %1312 = vst.msk [vmem:[%s192 + $0x20] sm:$0xff] %vm1307, %v1279
      %1313 = vst.msk [vmem:[%s192 + $0x28] sm:$0xff] %vm1307, %v1280
      %1314 = vst.msk [vmem:[%s192 + $0x30] sm:$0xff] %vm1307, %v1281
      %1315 = vst.msk [vmem:[%s192 + $0x38] sm:$0xff] %vm1307, %v1282
      %1316 = vst.msk [vmem:[%s192 + $0x40] sm:$0xff] %vm1307, %v1283
      %1317 = vst.msk [vmem:[%s192 + $0x48] sm:$0xff] %vm1307, %v1284
      %1318 = vst.msk [vmem:[%s192 + $0x50] sm:$0xff] %vm1307, %v1285
      %1319 = vst.msk [vmem:[%s192 + $0x58] sm:$0xff] %vm1307, %v1286
      %1320 = vst.msk [vmem:[%s192 + $0x60] sm:$0xff] %vm1307, %v1287
      %1321 = vst.msk [vmem:[%s192 + $0x68] sm:$0xff] %vm1307, %v1288
      %1322 = vst.msk [vmem:[%s192 + $0x70] sm:$0xff] %vm1307, %v1289
      %1323 = vst.msk [vmem:[%s192 + $0x78] sm:$0xff] %vm1307, %v1290
      %1324 = vst.msk [vmem:[%s192 + $0x80] sm:$0xff] %vm1307, %v1291
      %1325 = vst.msk [vmem:[%s192 + $0x88] sm:$0xff] %vm1307, %v1292
      %1326 = vst.msk [vmem:[%s192 + $0x90] sm:$0xff] %vm1307, %v1293
      %1327 = vst.msk [vmem:[%s192 + $0x98] sm:$0xff] %vm1307, %v1294
      %1328 = vst.msk [vmem:[%s192 + $0xa0] sm:$0xff] %vm1307, %v1295
      %1329 = vst.msk [vmem:[%s192 + $0xa8] sm:$0xff] %vm1307, %v1296
      %1330 = vst.msk [vmem:[%s192 + $0xb0] sm:$0xff] %vm1307, %v1297
      %1331 = vst.msk [vmem:[%s192 + $0xb8] sm:$0xff] %vm1307, %v1298
      %1332 = vst.msk [vmem:[%s192 + $0xc0] sm:$0xff] %vm1307, %v1299
      %1333 = vst.msk [vmem:[%s192 + $0xc8] sm:$0xff] %vm1307, %v1300
      %1334 = vst.msk [vmem:[%s192 + $0xd0] sm:$0xff] %vm1307, %v1301
      %1335 = vst.msk [vmem:[%s192 + $0xd8] sm:$0xff] %vm1307, %v1302
      %1336 = vst.msk [vmem:[%s192 + $0xe0] sm:$0xff] %vm1307, %v1303
      %1337 = vst.msk [vmem:[%s192 + $0xe8] sm:$0xff] %vm1307, %v1304
      %1338 = vst.msk [vmem:[%s192 + $0xf0] sm:$0xff] %vm1307, %v1305
      %1339 = vst.msk [vmem:[%s192 + $0xf8] sm:$0xff] %vm1307, %v1306
      %s1340 = smul.u32 32, %s19
      %p1341 = scmp.lt.s32.totalorder %s18, 1
      %s1342 = scalar_select %p1341, %s18, 1
      %p1343 = scmp.lt.s32.totalorder %s1340, 31
      %s1344 = scalar_select %p1343, %s1340, 31
      %s1345 = smul.addr %s1342, 32
      %s1346 = sadd.s32 %s1344, %s1345
      %s1347 = smul.addr %s1346, 8
      %s1348 = scalar_lea.vmem %s3, %s1347
      // Predicated region
      $region33: #{tpu_custom_call.1} parent=31 // pred_check
        %p1349 = pneg %p114
      $region34: #{tpu_custom_call.1} parent=31 // pred_check_branch
        %1351 = sbr.rel (%p1349) target = $region36
      $region35: #{tpu_custom_call.1} parent=31 // pred_region
        %s1352 = smul.u32 32, %s19
      $region36: #{tpu_custom_call.1} parent=31 // pred_fallthru
        _
    $region32: #{tpu_custom_call.1} parent=5 // pred_fallthru
      _
    %p1353 = scmp.le.s32.totalorder 2, %s9
    // Predicated region
    $region37: #{tpu_custom_call.1} parent=5 // pred_check
      %p1354 = pneg %p1353
    $region38: #{tpu_custom_call.1} parent=5 // pred_check_branch
      %1356 = sbr.rel (%p1354) target = $region40
    $region39: #{tpu_custom_call.1} parent=5 // pred_region
      %s1357 = ssub.s32 %s9, 2
      // Predicated region
      $region41: #{tpu_custom_call.1} parent=39 // pred_check
        %p1358 = pneg %p120
      $region42: #{tpu_custom_call.1} parent=39 // pred_check_branch
        %1360 = sbr.rel (%p1358) target = $region44
      $region43: #{tpu_custom_call.1} parent=39 // pred_region
        %s1361 = smul.u32 32, %s21
        %p1362 = scmp.lt.s32.totalorder %s20, 1
        %s1363 = scalar_select %p1362, %s20, 1
        %p1364 = scmp.lt.s32.totalorder %s1361, 31
        %s1365 = scalar_select %p1364, %s1361, 31
        %s1366 = smul.addr %s1363, 32
        %s1367 = sadd.s32 %s1365, %s1366
        %s1368 = smul.addr %s1367, 8
        %s1369 = scalar_lea.vmem %s3, %s1368
      $region44: #{tpu_custom_call.1} parent=39 // pred_fallthru
        _
    $region40: #{tpu_custom_call.1} parent=5 // pred_fallthru
      _
  $region6: #{tpu_custom_call.1} parent=0 // loop_footer
    %s13 = sadd.s32 1, %s9
  $region7: #{tpu_custom_call.1} parent=0 // loop_footer_branch
    %8 = sbr.rel target = $region3
  $region8: #{tpu_custom_call.1} parent=0 // loop_exit
    _

</llo_original>
